<compile_context>
chip_gen: v6e
topology: v6e:2x2x1
jax: 0.10.0
libtpu: 0.0.40
codegen_flags: <defaults>
</compile_context>

<pallas_src>
import functools
import math

import jax
import jax.numpy as jnp
import numpy as np
from jax.experimental import pallas as pl
from jax.experimental.pallas import tpu as pltpu

# ------------------------- configuration (module defaults) ------------------
B = 2
SEQ = 16
DIM = 64
HEADS = 4
HEAD_DIM = DIM // HEADS      # 16 -> divisible by 8 and <= 128, as asserted
LANE = 128                   # per-segment lane padding (vreg lane width)


# ------------------------------ Pallas kernel --------------------------------
def _attention_kernel(x_ref, wqkv_ref, bqkv_ref, wo_ref, bo_ref, o_ref, *,
                      batch, seq, num_heads, lane):
    c = o_ref.shape[-1]

    # Fused QKV projection for BOTH batch elements in one MXU pass:
    # (B*N, C) @ (C, H*3*128), bf16 operands, f32 accumulation.
    qkv = jnp.dot(x_ref[...], wqkv_ref[...], preferred_element_type=jnp.float32)
    qkv = (qkv + bqkv_ref[...]).astype(jnp.bfloat16)        # (B*N, H*3*lane)

    wo = wo_ref[...]                                        # (H*lane, C) bf16, zero pad rows
    bo = bo_ref[...]                                        # (1, C) f32

    out_rows = []
    for b in range(batch):            # static unroll: batch folded into one call
        r0, r1 = b * seq, (b + 1) * seq
        out_b = jnp.zeros((seq, c), jnp.float32)
        for h in range(num_heads):    # static unroll over heads
            base = 3 * h * lane
            # 128-lane-aligned slices (no relayout); reproduces the reference
            # cat(q,k,v) -> view -> split channel interleaving exactly.
            q = qkv[r0:r1, base:base + lane]                 # (seq, lane)
            k = qkv[r0:r1, base + lane:base + 2 * lane]      # (seq, lane)
            v = qkv[r0:r1, base + 2 * lane:base + 3 * lane]  # (seq, lane)
            # Scale 1/sqrt(head_dim) is already folded into the q weight columns.
            s = jax.lax.dot_general(q, k, (((1,), (1,)), ((), ())),
                                    preferred_element_type=jnp.float32)  # (seq, seq)
            # Exact softmax in f32.
            p = jnp.exp(s - jnp.max(s, axis=-1, keepdims=True))
            p = p / jnp.sum(p, axis=-1, keepdims=True)
            acc = jnp.dot(p.astype(jnp.bfloat16), v,
                          preferred_element_type=jnp.float32)            # (seq, lane)
            # Out-projection decomposed per head: accumulate, no lane concat.
            out_b = out_b + jnp.dot(acc.astype(jnp.bfloat16),
                                    wo[h * lane:(h + 1) * lane, :],
                                    preferred_element_type=jnp.float32)  # (seq, C)
        out_rows.append(out_b + bo)

    # Single store of the full (B*N, C) result (row concat is sublane-aligned).
    o_ref[...] = jnp.concatenate(out_rows, axis=0).astype(o_ref.dtype)


def attention_forward(x, wq, bq, wk, bk, wv, bv, wo, bo, *, num_heads):
    Bb, N, C = x.shape
    head_dim = C // num_heads
    scale = head_dim ** -0.5
    nseg = 3 * num_heads

    # Fused QKV weight with the reference's cat(q,k,v) channel order.
    wqkv = jnp.concatenate([wq, wk, wv], axis=1)                      # (C, 3C)
    bqkv = jnp.concatenate([bq, bk, bv], axis=0)                      # (3C,)

    # Fold the attention scale into the per-head q segments (segment % 3 == 0
    # in the reference's per-head view of the concatenated channels).
    seg_scale = jnp.where((jnp.arange(3 * C) // head_dim) % 3 == 0,
                          scale, 1.0).astype(jnp.float32)
    wqkv = wqkv * seg_scale[None, :]
    bqkv = bqkv * seg_scale

    # Zero-pad every head_dim-wide segment to its own 128-lane column block so
    # all in-kernel slices are vreg-aligned; zero lanes contribute nothing.
    wqkv_pad = jnp.pad(wqkv.reshape(C, nseg, head_dim),
                       ((0, 0), (0, 0), (0, LANE - head_dim))
                       ).reshape(C, nseg * LANE)                      # (C, H*3*128)
    bqkv_pad = jnp.pad(bqkv.reshape(nseg, head_dim),
                       ((0, 0), (0, LANE - head_dim))
                       ).reshape(1, nseg * LANE)                      # (1, H*3*128)
    # Out-proj weight split per head with matching zero rows.
    wo_pad = jnp.pad(wo.reshape(num_heads, head_dim, C),
                     ((0, 0), (0, LANE - head_dim), (0, 0))
                     ).reshape(num_heads * LANE, C)                   # (H*128, C)

    kernel = functools.partial(_attention_kernel, batch=Bb, seq=N,
                               num_heads=num_heads, lane=LANE)
    out2d = pl.pallas_call(
        kernel,
        out_shape=jax.ShapeDtypeStruct((Bb * N, C), jnp.float32),
        in_specs=[pl.BlockSpec(memory_space=pltpu.MemorySpace.VMEM)] * 5,
        out_specs=pl.BlockSpec(memory_space=pltpu.MemorySpace.VMEM),
    )(x.reshape(Bb * N, C).astype(jnp.bfloat16),
      wqkv_pad.astype(jnp.bfloat16),
      bqkv_pad.astype(jnp.float32),
      wo_pad.astype(jnp.bfloat16),
      bo.reshape(1, C).astype(jnp.float32))
    return out2d.reshape(Bb, N, C).astype(x.dtype)


# --------------------------- pure-JAX reference ------------------------------
def attention_reference(x, wq, bq, wk, bk, wv, bv, wo, bo, *, num_heads):
    """Literal transcription of the PyTorch forward (qkv_bias=True, qk_norm=False)."""
    Bb, N, C = x.shape
    head_dim = C // num_heads
    q = x @ wq + bq
    k = x @ wk + bk
    v = x @ wv + bv
    qkv = jnp.concatenate([q, k, v], axis=-1)
    split_size = qkv.shape[-1] // num_heads // 3
    qkv = qkv.reshape(Bb, -1, num_heads, split_size * 3)
    q, k, v = jnp.split(qkv, 3, axis=-1)
    q = q.reshape(Bb, N, num_heads, head_dim).transpose(0, 2, 1, 3)
    k = k.reshape(Bb, N, num_heads, head_dim).transpose(0, 2, 1, 3)
    v = v.reshape(Bb, N, num_heads, head_dim).transpose(0, 2, 1, 3)
    s = jnp.einsum("bhqd,bhkd->bhqk", q, k) * (head_dim ** -0.5)
    p = jax.nn.softmax(s, axis=-1)
    o = jnp.einsum("bhqk,bhkd->bhqd", p, v)
    o = o.transpose(0, 2, 1, 3).reshape(Bb, N, C)
    return o @ wo + bo


# ----------------------------------- main ------------------------------------
if __name__ == "__main__":
    key = jax.random.PRNGKey(0)
    ks = jax.random.split(key, 9)

    def lin(kw, kb, fan_in, fan_out):
        w = jax.random.normal(kw, (fan_in, fan_out), jnp.float32) / math.sqrt(fan_in)
        b = jax.random.normal(kb, (fan_out,), jnp.float32) * 0.02
        return w, b

    x = jax.random.normal(ks[0], (B, SEQ, DIM), jnp.float32)
    wq, bq = lin(ks[1], ks[2], DIM, DIM)
    wk, bk = lin(ks[3], ks[4], DIM, DIM)
    wv, bv = lin(ks[5], ks[6], DIM, DIM)
    wo, bo = lin(ks[7], ks[8], DIM, DIM)

    fwd = jax.jit(functools.partial(attention_forward, num_heads=HEADS))
    out = jax.block_until_ready(fwd(x, wq, bq, wk, bk, wv, bv, wo, bo))

    ref = attention_reference(x, wq, bq, wk, bk, wv, bv, wo, bo, num_heads=HEADS)
    assert out.shape == (B, SEQ, DIM), out.shape
    assert bool(jnp.all(jnp.isfinite(out)))
    # Tolerance sized for bf16 MXU operands (f32 accumulation) vs an f32 reference.
    np.testing.assert_allclose(np.asarray(out), np.asarray(ref),
                               atol=3e-2, rtol=3e-2)
    print("KERNEL_OK")
</pallas_src>

<mosaic_0001>
module attributes {stable_mosaic.version = 11 : i64} {
  func.func @_attention_kernel(%arg0: memref<32x64xbf16, #tpu.memory_space<vmem>>, %arg1: memref<64x1536xbf16, #tpu.memory_space<vmem>>, %arg2: memref<1x1536xf32, #tpu.memory_space<vmem>>, %arg3: memref<512x64xbf16, #tpu.memory_space<vmem>>, %arg4: memref<1x64xf32, #tpu.memory_space<vmem>>, %arg5: memref<32x64xf32, #tpu.memory_space<vmem>>) attributes {dimension_semantics = [], scalar_prefetch = 0 : i64, scratch_operands = 0 : i64, tpu.core_type = #tpu.core_type<tc>} {
    %c0 = arith.constant 0 : index
    %c0_0 = arith.constant 0 : index
    %0 = vector.load %arg0[%c0, %c0_0] : memref<32x64xbf16, #tpu.memory_space<vmem>>, vector<32x64xbf16>
    %c0_1 = arith.constant 0 : index
    %c0_2 = arith.constant 0 : index
    %1 = vector.load %arg1[%c0_1, %c0_2] : memref<64x1536xbf16, #tpu.memory_space<vmem>>, vector<64x1536xbf16>
    %cst = arith.constant dense<0.000000e+00> : vector<32x1536xf32>
    %2 = tpu.matmul %0, %1, %cst {dimension_numbers = #tpu.dot_dimension_numbers<[1], [0], [0], [1], [0, 0, 1, 1], [], []>} : vector<32x64xbf16>, vector<64x1536xbf16>, vector<32x1536xf32> -> vector<32x1536xf32>
    %c0_3 = arith.constant 0 : index
    %c0_4 = arith.constant 0 : index
    %3 = vector.load %arg2[%c0_3, %c0_4] : memref<1x1536xf32, #tpu.memory_space<vmem>>, vector<1x1536xf32>
    %4 = vector.broadcast %3 : vector<1x1536xf32> to vector<32x1536xf32>
    %5 = arith.addf %2, %4 : vector<32x1536xf32>
    %6 = arith.truncf %5 : vector<32x1536xf32> to vector<32x1536xbf16>
    %c0_5 = arith.constant 0 : index
    %c0_6 = arith.constant 0 : index
    %7 = vector.load %arg3[%c0_5, %c0_6] : memref<512x64xbf16, #tpu.memory_space<vmem>>, vector<512x64xbf16>
    %c0_7 = arith.constant 0 : index
    %c0_8 = arith.constant 0 : index
    %8 = vector.load %arg4[%c0_7, %c0_8] : memref<1x64xf32, #tpu.memory_space<vmem>>, vector<1x64xf32>
    %cst_9 = arith.constant 0.000000e+00 : f32
    %9 = vector.broadcast %cst_9 : f32 to vector<16x64xf32>
    %10 = vector.extract_strided_slice %6 {offsets = [0, 0], sizes = [16, 128], strides = [1, 1]} : vector<32x1536xbf16> to vector<16x128xbf16>
    %11 = vector.extract_strided_slice %6 {offsets = [0, 128], sizes = [16, 128], strides = [1, 1]} : vector<32x1536xbf16> to vector<16x128xbf16>
    %12 = vector.extract_strided_slice %6 {offsets = [0, 256], sizes = [16, 128], strides = [1, 1]} : vector<32x1536xbf16> to vector<16x128xbf16>
    %cst_10 = arith.constant dense<0.000000e+00> : vector<16x16xf32>
    %13 = tpu.matmul %10, %11, %cst_10 {dimension_numbers = #tpu.dot_dimension_numbers<[1], [1], [0], [0], [0, 0, 1, 0], [], []>} : vector<16x128xbf16>, vector<16x128xbf16>, vector<16x16xf32> -> vector<16x16xf32>
    %cst_11 = arith.constant dense<0xFF800000> : vector<16xf32>
    %14 = vector.multi_reduction <maximumf>, %13, %cst_11 [1] : vector<16x16xf32> to vector<16xf32>
    %15 = vector.shape_cast %14 : vector<16xf32> to vector<16x1xf32>
    %16 = vector.broadcast %15 : vector<16x1xf32> to vector<16x16xf32>
    %17 = arith.subf %13, %16 : vector<16x16xf32>
    %18 = math.exp %17 : vector<16x16xf32>
    %cst_12 = arith.constant dense<0.000000e+00> : vector<16xf32>
    %19 = vector.multi_reduction <add>, %18, %cst_12 [1] : vector<16x16xf32> to vector<16xf32>
    %20 = vector.shape_cast %19 : vector<16xf32> to vector<16x1xf32>
    %21 = vector.broadcast %20 : vector<16x1xf32> to vector<16x16xf32>
    %22 = arith.divf %18, %21 : vector<16x16xf32>
    %23 = arith.truncf %22 : vector<16x16xf32> to vector<16x16xbf16>
    %cst_13 = arith.constant dense<0.000000e+00> : vector<16x128xf32>
    %24 = tpu.matmul %23, %12, %cst_13 {dimension_numbers = #tpu.dot_dimension_numbers<[1], [0], [0], [1], [0, 0, 1, 1], [], []>} : vector<16x16xbf16>, vector<16x128xbf16>, vector<16x128xf32> -> vector<16x128xf32>
    %25 = arith.truncf %24 : vector<16x128xf32> to vector<16x128xbf16>
    %26 = vector.extract_strided_slice %7 {offsets = [0, 0], sizes = [128, 64], strides = [1, 1]} : vector<512x64xbf16> to vector<128x64xbf16>
    %cst_14 = arith.constant dense<0.000000e+00> : vector<16x64xf32>
    %27 = tpu.matmul %25, %26, %cst_14 {dimension_numbers = #tpu.dot_dimension_numbers<[1], [0], [0], [1], [0, 0, 1, 1], [], []>} : vector<16x128xbf16>, vector<128x64xbf16>, vector<16x64xf32> -> vector<16x64xf32>
    %28 = arith.addf %9, %27 : vector<16x64xf32>
    %29 = vector.extract_strided_slice %6 {offsets = [0, 384], sizes = [16, 128], strides = [1, 1]} : vector<32x1536xbf16> to vector<16x128xbf16>
    %30 = vector.extract_strided_slice %6 {offsets = [0, 512], sizes = [16, 128], strides = [1, 1]} : vector<32x1536xbf16> to vector<16x128xbf16>
    %31 = vector.extract_strided_slice %6 {offsets = [0, 640], sizes = [16, 128], strides = [1, 1]} : vector<32x1536xbf16> to vector<16x128xbf16>
    %cst_15 = arith.constant dense<0.000000e+00> : vector<16x16xf32>
    %32 = tpu.matmul %29, %30, %cst_15 {dimension_numbers = #tpu.dot_dimension_numbers<[1], [1], [0], [0], [0, 0, 1, 0], [], []>} : vector<16x128xbf16>, vector<16x128xbf16>, vector<16x16xf32> -> vector<16x16xf32>
    %cst_16 = arith.constant dense<0xFF800000> : vector<16xf32>
    %33 = vector.multi_reduction <maximumf>, %32, %cst_16 [1] : vector<16x16xf32> to vector<16xf32>
    %34 = vector.shape_cast %33 : vector<16xf32> to vector<16x1xf32>
    %35 = vector.broadcast %34 : vector<16x1xf32> to vector<16x16xf32>
    %36 = arith.subf %32, %35 : vector<16x16xf32>
    %37 = math.exp %36 : vector<16x16xf32>
    %cst_17 = arith.constant dense<0.000000e+00> : vector<16xf32>
    %38 = vector.multi_reduction <add>, %37, %cst_17 [1] : vector<16x16xf32> to vector<16xf32>
    %39 = vector.shape_cast %38 : vector<16xf32> to vector<16x1xf32>
    %40 = vector.broadcast %39 : vector<16x1xf32> to vector<16x16xf32>
    %41 = arith.divf %37, %40 : vector<16x16xf32>
    %42 = arith.truncf %41 : vector<16x16xf32> to vector<16x16xbf16>
    %cst_18 = arith.constant dense<0.000000e+00> : vector<16x128xf32>
    %43 = tpu.matmul %42, %31, %cst_18 {dimension_numbers = #tpu.dot_dimension_numbers<[1], [0], [0], [1], [0, 0, 1, 1], [], []>} : vector<16x16xbf16>, vector<16x128xbf16>, vector<16x128xf32> -> vector<16x128xf32>
    %44 = arith.truncf %43 : vector<16x128xf32> to vector<16x128xbf16>
    %45 = vector.extract_strided_slice %7 {offsets = [128, 0], sizes = [128, 64], strides = [1, 1]} : vector<512x64xbf16> to vector<128x64xbf16>
    %cst_19 = arith.constant dense<0.000000e+00> : vector<16x64xf32>
    %46 = tpu.matmul %44, %45, %cst_19 {dimension_numbers = #tpu.dot_dimension_numbers<[1], [0], [0], [1], [0, 0, 1, 1], [], []>} : vector<16x128xbf16>, vector<128x64xbf16>, vector<16x64xf32> -> vector<16x64xf32>
    %47 = arith.addf %28, %46 : vector<16x64xf32>
    %48 = vector.extract_strided_slice %6 {offsets = [0, 768], sizes = [16, 128], strides = [1, 1]} : vector<32x1536xbf16> to vector<16x128xbf16>
    %49 = vector.extract_strided_slice %6 {offsets = [0, 896], sizes = [16, 128], strides = [1, 1]} : vector<32x1536xbf16> to vector<16x128xbf16>
    %50 = vector.extract_strided_slice %6 {offsets = [0, 1024], sizes = [16, 128], strides = [1, 1]} : vector<32x1536xbf16> to vector<16x128xbf16>
    %cst_20 = arith.constant dense<0.000000e+00> : vector<16x16xf32>
    %51 = tpu.matmul %48, %49, %cst_20 {dimension_numbers = #tpu.dot_dimension_numbers<[1], [1], [0], [0], [0, 0, 1, 0], [], []>} : vector<16x128xbf16>, vector<16x128xbf16>, vector<16x16xf32> -> vector<16x16xf32>
    %cst_21 = arith.constant dense<0xFF800000> : vector<16xf32>
    %52 = vector.multi_reduction <maximumf>, %51, %cst_21 [1] : vector<16x16xf32> to vector<16xf32>
    %53 = vector.shape_cast %52 : vector<16xf32> to vector<16x1xf32>
    %54 = vector.broadcast %53 : vector<16x1xf32> to vector<16x16xf32>
    %55 = arith.subf %51, %54 : vector<16x16xf32>
    %56 = math.exp %55 : vector<16x16xf32>
    %cst_22 = arith.constant dense<0.000000e+00> : vector<16xf32>
    %57 = vector.multi_reduction <add>, %56, %cst_22 [1] : vector<16x16xf32> to vector<16xf32>
    %58 = vector.shape_cast %57 : vector<16xf32> to vector<16x1xf32>
    %59 = vector.broadcast %58 : vector<16x1xf32> to vector<16x16xf32>
    %60 = arith.divf %56, %59 : vector<16x16xf32>
    %61 = arith.truncf %60 : vector<16x16xf32> to vector<16x16xbf16>
    %cst_23 = arith.constant dense<0.000000e+00> : vector<16x128xf32>
    %62 = tpu.matmul %61, %50, %cst_23 {dimension_numbers = #tpu.dot_dimension_numbers<[1], [0], [0], [1], [0, 0, 1, 1], [], []>} : vector<16x16xbf16>, vector<16x128xbf16>, vector<16x128xf32> -> vector<16x128xf32>
    %63 = arith.truncf %62 : vector<16x128xf32> to vector<16x128xbf16>
    %64 = vector.extract_strided_slice %7 {offsets = [256, 0], sizes = [128, 64], strides = [1, 1]} : vector<512x64xbf16> to vector<128x64xbf16>
    %cst_24 = arith.constant dense<0.000000e+00> : vector<16x64xf32>
    %65 = tpu.matmul %63, %64, %cst_24 {dimension_numbers = #tpu.dot_dimension_numbers<[1], [0], [0], [1], [0, 0, 1, 1], [], []>} : vector<16x128xbf16>, vector<128x64xbf16>, vector<16x64xf32> -> vector<16x64xf32>
    %66 = arith.addf %47, %65 : vector<16x64xf32>
    %67 = vector.extract_strided_slice %6 {offsets = [0, 1152], sizes = [16, 128], strides = [1, 1]} : vector<32x1536xbf16> to vector<16x128xbf16>
    %68 = vector.extract_strided_slice %6 {offsets = [0, 1280], sizes = [16, 128], strides = [1, 1]} : vector<32x1536xbf16> to vector<16x128xbf16>
    %69 = vector.extract_strided_slice %6 {offsets = [0, 1408], sizes = [16, 128], strides = [1, 1]} : vector<32x1536xbf16> to vector<16x128xbf16>
    %cst_25 = arith.constant dense<0.000000e+00> : vector<16x16xf32>
    %70 = tpu.matmul %67, %68, %cst_25 {dimension_numbers = #tpu.dot_dimension_numbers<[1], [1], [0], [0], [0, 0, 1, 0], [], []>} : vector<16x128xbf16>, vector<16x128xbf16>, vector<16x16xf32> -> vector<16x16xf32>
    %cst_26 = arith.constant dense<0xFF800000> : vector<16xf32>
    %71 = vector.multi_reduction <maximumf>, %70, %cst_26 [1] : vector<16x16xf32> to vector<16xf32>
    %72 = vector.shape_cast %71 : vector<16xf32> to vector<16x1xf32>
    %73 = vector.broadcast %72 : vector<16x1xf32> to vector<16x16xf32>
    %74 = arith.subf %70, %73 : vector<16x16xf32>
    %75 = math.exp %74 : vector<16x16xf32>
    %cst_27 = arith.constant dense<0.000000e+00> : vector<16xf32>
    %76 = vector.multi_reduction <add>, %75, %cst_27 [1] : vector<16x16xf32> to vector<16xf32>
    %77 = vector.shape_cast %76 : vector<16xf32> to vector<16x1xf32>
    %78 = vector.broadcast %77 : vector<16x1xf32> to vector<16x16xf32>
    %79 = arith.divf %75, %78 : vector<16x16xf32>
    %80 = arith.truncf %79 : vector<16x16xf32> to vector<16x16xbf16>
    %cst_28 = arith.constant dense<0.000000e+00> : vector<16x128xf32>
    %81 = tpu.matmul %80, %69, %cst_28 {dimension_numbers = #tpu.dot_dimension_numbers<[1], [0], [0], [1], [0, 0, 1, 1], [], []>} : vector<16x16xbf16>, vector<16x128xbf16>, vector<16x128xf32> -> vector<16x128xf32>
    %82 = arith.truncf %81 : vector<16x128xf32> to vector<16x128xbf16>
    %83 = vector.extract_strided_slice %7 {offsets = [384, 0], sizes = [128, 64], strides = [1, 1]} : vector<512x64xbf16> to vector<128x64xbf16>
    %cst_29 = arith.constant dense<0.000000e+00> : vector<16x64xf32>
    %84 = tpu.matmul %82, %83, %cst_29 {dimension_numbers = #tpu.dot_dimension_numbers<[1], [0], [0], [1], [0, 0, 1, 1], [], []>} : vector<16x128xbf16>, vector<128x64xbf16>, vector<16x64xf32> -> vector<16x64xf32>
    %85 = arith.addf %66, %84 : vector<16x64xf32>
    %86 = vector.broadcast %8 : vector<1x64xf32> to vector<16x64xf32>
    %87 = arith.addf %85, %86 : vector<16x64xf32>
    %cst_30 = arith.constant 0.000000e+00 : f32
    %88 = vector.broadcast %cst_30 : f32 to vector<16x64xf32>
    %89 = vector.extract_strided_slice %6 {offsets = [16, 0], sizes = [16, 128], strides = [1, 1]} : vector<32x1536xbf16> to vector<16x128xbf16>
    %90 = vector.extract_strided_slice %6 {offsets = [16, 128], sizes = [16, 128], strides = [1, 1]} : vector<32x1536xbf16> to vector<16x128xbf16>
    %91 = vector.extract_strided_slice %6 {offsets = [16, 256], sizes = [16, 128], strides = [1, 1]} : vector<32x1536xbf16> to vector<16x128xbf16>
    %cst_31 = arith.constant dense<0.000000e+00> : vector<16x16xf32>
    %92 = tpu.matmul %89, %90, %cst_31 {dimension_numbers = #tpu.dot_dimension_numbers<[1], [1], [0], [0], [0, 0, 1, 0], [], []>} : vector<16x128xbf16>, vector<16x128xbf16>, vector<16x16xf32> -> vector<16x16xf32>
    %cst_32 = arith.constant dense<0xFF800000> : vector<16xf32>
    %93 = vector.multi_reduction <maximumf>, %92, %cst_32 [1] : vector<16x16xf32> to vector<16xf32>
    %94 = vector.shape_cast %93 : vector<16xf32> to vector<16x1xf32>
    %95 = vector.broadcast %94 : vector<16x1xf32> to vector<16x16xf32>
    %96 = arith.subf %92, %95 : vector<16x16xf32>
    %97 = math.exp %96 : vector<16x16xf32>
    %cst_33 = arith.constant dense<0.000000e+00> : vector<16xf32>
    %98 = vector.multi_reduction <add>, %97, %cst_33 [1] : vector<16x16xf32> to vector<16xf32>
    %99 = vector.shape_cast %98 : vector<16xf32> to vector<16x1xf32>
    %100 = vector.broadcast %99 : vector<16x1xf32> to vector<16x16xf32>
    %101 = arith.divf %97, %100 : vector<16x16xf32>
    %102 = arith.truncf %101 : vector<16x16xf32> to vector<16x16xbf16>
    %cst_34 = arith.constant dense<0.000000e+00> : vector<16x128xf32>
    %103 = tpu.matmul %102, %91, %cst_34 {dimension_numbers = #tpu.dot_dimension_numbers<[1], [0], [0], [1], [0, 0, 1, 1], [], []>} : vector<16x16xbf16>, vector<16x128xbf16>, vector<16x128xf32> -> vector<16x128xf32>
    %104 = arith.truncf %103 : vector<16x128xf32> to vector<16x128xbf16>
    %105 = vector.extract_strided_slice %7 {offsets = [0, 0], sizes = [128, 64], strides = [1, 1]} : vector<512x64xbf16> to vector<128x64xbf16>
    %cst_35 = arith.constant dense<0.000000e+00> : vector<16x64xf32>
    %106 = tpu.matmul %104, %105, %cst_35 {dimension_numbers = #tpu.dot_dimension_numbers<[1], [0], [0], [1], [0, 0, 1, 1], [], []>} : vector<16x128xbf16>, vector<128x64xbf16>, vector<16x64xf32> -> vector<16x64xf32>
    %107 = arith.addf %88, %106 : vector<16x64xf32>
    %108 = vector.extract_strided_slice %6 {offsets = [16, 384], sizes = [16, 128], strides = [1, 1]} : vector<32x1536xbf16> to vector<16x128xbf16>
    %109 = vector.extract_strided_slice %6 {offsets = [16, 512], sizes = [16, 128], strides = [1, 1]} : vector<32x1536xbf16> to vector<16x128xbf16>
    %110 = vector.extract_strided_slice %6 {offsets = [16, 640], sizes = [16, 128], strides = [1, 1]} : vector<32x1536xbf16> to vector<16x128xbf16>
    %cst_36 = arith.constant dense<0.000000e+00> : vector<16x16xf32>
    %111 = tpu.matmul %108, %109, %cst_36 {dimension_numbers = #tpu.dot_dimension_numbers<[1], [1], [0], [0], [0, 0, 1, 0], [], []>} : vector<16x128xbf16>, vector<16x128xbf16>, vector<16x16xf32> -> vector<16x16xf32>
    %cst_37 = arith.constant dense<0xFF800000> : vector<16xf32>
    %112 = vector.multi_reduction <maximumf>, %111, %cst_37 [1] : vector<16x16xf32> to vector<16xf32>
    %113 = vector.shape_cast %112 : vector<16xf32> to vector<16x1xf32>
    %114 = vector.broadcast %113 : vector<16x1xf32> to vector<16x16xf32>
    %115 = arith.subf %111, %114 : vector<16x16xf32>
    %116 = math.exp %115 : vector<16x16xf32>
    %cst_38 = arith.constant dense<0.000000e+00> : vector<16xf32>
    %117 = vector.multi_reduction <add>, %116, %cst_38 [1] : vector<16x16xf32> to vector<16xf32>
    %118 = vector.shape_cast %117 : vector<16xf32> to vector<16x1xf32>
    %119 = vector.broadcast %118 : vector<16x1xf32> to vector<16x16xf32>
    %120 = arith.divf %116, %119 : vector<16x16xf32>
    %121 = arith.truncf %120 : vector<16x16xf32> to vector<16x16xbf16>
    %cst_39 = arith.constant dense<0.000000e+00> : vector<16x128xf32>
    %122 = tpu.matmul %121, %110, %cst_39 {dimension_numbers = #tpu.dot_dimension_numbers<[1], [0], [0], [1], [0, 0, 1, 1], [], []>} : vector<16x16xbf16>, vector<16x128xbf16>, vector<16x128xf32> -> vector<16x128xf32>
    %123 = arith.truncf %122 : vector<16x128xf32> to vector<16x128xbf16>
    %124 = vector.extract_strided_slice %7 {offsets = [128, 0], sizes = [128, 64], strides = [1, 1]} : vector<512x64xbf16> to vector<128x64xbf16>
    %cst_40 = arith.constant dense<0.000000e+00> : vector<16x64xf32>
    %125 = tpu.matmul %123, %124, %cst_40 {dimension_numbers = #tpu.dot_dimension_numbers<[1], [0], [0], [1], [0, 0, 1, 1], [], []>} : vector<16x128xbf16>, vector<128x64xbf16>, vector<16x64xf32> -> vector<16x64xf32>
    %126 = arith.addf %107, %125 : vector<16x64xf32>
    %127 = vector.extract_strided_slice %6 {offsets = [16, 768], sizes = [16, 128], strides = [1, 1]} : vector<32x1536xbf16> to vector<16x128xbf16>
    %128 = vector.extract_strided_slice %6 {offsets = [16, 896], sizes = [16, 128], strides = [1, 1]} : vector<32x1536xbf16> to vector<16x128xbf16>
    %129 = vector.extract_strided_slice %6 {offsets = [16, 1024], sizes = [16, 128], strides = [1, 1]} : vector<32x1536xbf16> to vector<16x128xbf16>
    %cst_41 = arith.constant dense<0.000000e+00> : vector<16x16xf32>
    %130 = tpu.matmul %127, %128, %cst_41 {dimension_numbers = #tpu.dot_dimension_numbers<[1], [1], [0], [0], [0, 0, 1, 0], [], []>} : vector<16x128xbf16>, vector<16x128xbf16>, vector<16x16xf32> -> vector<16x16xf32>
    %cst_42 = arith.constant dense<0xFF800000> : vector<16xf32>
    %131 = vector.multi_reduction <maximumf>, %130, %cst_42 [1] : vector<16x16xf32> to vector<16xf32>
    %132 = vector.shape_cast %131 : vector<16xf32> to vector<16x1xf32>
    %133 = vector.broadcast %132 : vector<16x1xf32> to vector<16x16xf32>
    %134 = arith.subf %130, %133 : vector<16x16xf32>
    %135 = math.exp %134 : vector<16x16xf32>
    %cst_43 = arith.constant dense<0.000000e+00> : vector<16xf32>
    %136 = vector.multi_reduction <add>, %135, %cst_43 [1] : vector<16x16xf32> to vector<16xf32>
    %137 = vector.shape_cast %136 : vector<16xf32> to vector<16x1xf32>
    %138 = vector.broadcast %137 : vector<16x1xf32> to vector<16x16xf32>
    %139 = arith.divf %135, %138 : vector<16x16xf32>
    %140 = arith.truncf %139 : vector<16x16xf32> to vector<16x16xbf16>
    %cst_44 = arith.constant dense<0.000000e+00> : vector<16x128xf32>
    %141 = tpu.matmul %140, %129, %cst_44 {dimension_numbers = #tpu.dot_dimension_numbers<[1], [0], [0], [1], [0, 0, 1, 1], [], []>} : vector<16x16xbf16>, vector<16x128xbf16>, vector<16x128xf32> -> vector<16x128xf32>
    %142 = arith.truncf %141 : vector<16x128xf32> to vector<16x128xbf16>
    %143 = vector.extract_strided_slice %7 {offsets = [256, 0], sizes = [128, 64], strides = [1, 1]} : vector<512x64xbf16> to vector<128x64xbf16>
    %cst_45 = arith.constant dense<0.000000e+00> : vector<16x64xf32>
    %144 = tpu.matmul %142, %143, %cst_45 {dimension_numbers = #tpu.dot_dimension_numbers<[1], [0], [0], [1], [0, 0, 1, 1], [], []>} : vector<16x128xbf16>, vector<128x64xbf16>, vector<16x64xf32> -> vector<16x64xf32>
    %145 = arith.addf %126, %144 : vector<16x64xf32>
    %146 = vector.extract_strided_slice %6 {offsets = [16, 1152], sizes = [16, 128], strides = [1, 1]} : vector<32x1536xbf16> to vector<16x128xbf16>
    %147 = vector.extract_strided_slice %6 {offsets = [16, 1280], sizes = [16, 128], strides = [1, 1]} : vector<32x1536xbf16> to vector<16x128xbf16>
    %148 = vector.extract_strided_slice %6 {offsets = [16, 1408], sizes = [16, 128], strides = [1, 1]} : vector<32x1536xbf16> to vector<16x128xbf16>
    %cst_46 = arith.constant dense<0.000000e+00> : vector<16x16xf32>
    %149 = tpu.matmul %146, %147, %cst_46 {dimension_numbers = #tpu.dot_dimension_numbers<[1], [1], [0], [0], [0, 0, 1, 0], [], []>} : vector<16x128xbf16>, vector<16x128xbf16>, vector<16x16xf32> -> vector<16x16xf32>
    %cst_47 = arith.constant dense<0xFF800000> : vector<16xf32>
    %150 = vector.multi_reduction <maximumf>, %149, %cst_47 [1] : vector<16x16xf32> to vector<16xf32>
    %151 = vector.shape_cast %150 : vector<16xf32> to vector<16x1xf32>
    %152 = vector.broadcast %151 : vector<16x1xf32> to vector<16x16xf32>
    %153 = arith.subf %149, %152 : vector<16x16xf32>
    %154 = math.exp %153 : vector<16x16xf32>
    %cst_48 = arith.constant dense<0.000000e+00> : vector<16xf32>
    %155 = vector.multi_reduction <add>, %154, %cst_48 [1] : vector<16x16xf32> to vector<16xf32>
    %156 = vector.shape_cast %155 : vector<16xf32> to vector<16x1xf32>
    %157 = vector.broadcast %156 : vector<16x1xf32> to vector<16x16xf32>
    %158 = arith.divf %154, %157 : vector<16x16xf32>
    %159 = arith.truncf %158 : vector<16x16xf32> to vector<16x16xbf16>
    %cst_49 = arith.constant dense<0.000000e+00> : vector<16x128xf32>
    %160 = tpu.matmul %159, %148, %cst_49 {dimension_numbers = #tpu.dot_dimension_numbers<[1], [0], [0], [1], [0, 0, 1, 1], [], []>} : vector<16x16xbf16>, vector<16x128xbf16>, vector<16x128xf32> -> vector<16x128xf32>
    %161 = arith.truncf %160 : vector<16x128xf32> to vector<16x128xbf16>
    %162 = vector.extract_strided_slice %7 {offsets = [384, 0], sizes = [128, 64], strides = [1, 1]} : vector<512x64xbf16> to vector<128x64xbf16>
    %cst_50 = arith.constant dense<0.000000e+00> : vector<16x64xf32>
    %163 = tpu.matmul %161, %162, %cst_50 {dimension_numbers = #tpu.dot_dimension_numbers<[1], [0], [0], [1], [0, 0, 1, 1], [], []>} : vector<16x128xbf16>, vector<128x64xbf16>, vector<16x64xf32> -> vector<16x64xf32>
    %164 = arith.addf %145, %163 : vector<16x64xf32>
    %165 = vector.broadcast %8 : vector<1x64xf32> to vector<16x64xf32>
    %166 = arith.addf %164, %165 : vector<16x64xf32>
    %167 = tpu.concatenate %87, %166 in 0 : vector<16x64xf32>, vector<16x64xf32> -> vector<32x64xf32>
    %c0_51 = arith.constant 0 : index
    %c0_52 = arith.constant 0 : index
    %168 = vector.load %arg5[%c0_51, %c0_52] : memref<32x64xf32, #tpu.memory_space<vmem>>, vector<32x64xf32>
    tpu.vector_store %arg5[%c0_51, %c0_52], %167 {strides = array<i32>} : memref<32x64xf32, #tpu.memory_space<vmem>>, vector<32x64xf32>,
    return
  }
}

</mosaic_0001>

<llo_original>
// kernel: attention_forward.1
$region0: #{attention_forward.1}
  #allocation0 [shape = 'u32[]', space=smem, size = 0x4, offset = 0x4, fixed_abs, tag = 'smem constant byte address 0x4 - core index']
  #allocation1 [shape = 'u32[144,128]{1,0:T(1,128)}', space=vmem, size = 0x12000, scoped, tag = 'internal scratch']
  %s0 = inlined_call_operand.vmem [shape: bf16[32,64], index: 0, kind: input, shape index: {}]
  %s1 = inlined_call_operand.vmem [shape: bf16[64,1536], index: 1, kind: input, shape index: {}]
  %s2 = inlined_call_operand.vmem [shape: f32[1,1536], index: 2, kind: input, shape index: {}]
  %s3 = inlined_call_operand.vmem [shape: bf16[512,64], index: 3, kind: input, shape index: {}]
  %s4 = inlined_call_operand.vmem [shape: f32[1,64], index: 4, kind: input, shape index: {}]
  %s5 = inlined_call_operand.hbm [shape: f32[32,64], index: 5, kind: output, shape index: {}]
  %s6 = sld [smem:[#allocation0]]
  $region30: #{attention_forward.1} parent=0
    _
  %s8 = ssub.s32 1, %s6
  %s9 = scalar_select 0, %s8, %s6
  $region1: #{attention_forward.1} parent=0
    #allocation2 [shape = 'u8[16384]{0}', space=vmem, size = 0x4000, scoped, tag = 'output window, operand 0, single buffered']
    #allocation3 [shape = 's32[1]{0}', space=sflag, size = 0x4, scoped, tag = 'scoped memory for attention_forward.1']
    %10 = vsyncpa [#allocation3], 0
    // Predicated region
    $region2: #{attention_forward.1} parent=1 // pred_check
      _
    $region3: #{attention_forward.1} parent=1 // pred_check_branch
      %12 = sbr.rel (0) target = $region5
    $region4: #{attention_forward.1} parent=1 // pred_region
      _
    $region5: #{attention_forward.1} parent=1 // pred_fallthru
      _
    // Predicated region
    $region6: #{attention_forward.1} parent=1 // pred_check
      _
    $region7: #{attention_forward.1} parent=1 // pred_check_branch
      %14 = sbr.rel (0) target = $region9
    $region8: #{attention_forward.1} parent=1 // pred_region
      _
    $region9: #{attention_forward.1} parent=1 // pred_fallthru
      _
    // Predicated region
    $region10: #{attention_forward.1} parent=1 // pred_check
      _
    $region11: #{attention_forward.1} parent=1 // pred_check_branch
      %16 = sbr.rel (0) target = $region13
    $region12: #{attention_forward.1} parent=1 // pred_region
      _
    $region13: #{attention_forward.1} parent=1 // pred_fallthru
      _
    // Predicated region
    $region14: #{attention_forward.1} parent=1 // pred_check
      _
    $region15: #{attention_forward.1} parent=1 // pred_check_branch
      %18 = sbr.rel (0) target = $region17
    $region16: #{attention_forward.1} parent=1 // pred_region
      _
    $region17: #{attention_forward.1} parent=1 // pred_fallthru
      _
    // Predicated region
    $region18: #{attention_forward.1} parent=1 // pred_check
      _
    $region19: #{attention_forward.1} parent=1 // pred_check_branch
      %20 = sbr.rel (0) target = $region21
    $region20: #{attention_forward.1} parent=1 // pred_region
      _
    $region21: #{attention_forward.1} parent=1 // pred_fallthru
      _
    %v22 = vld [vmem:[%s0] sm:$0xf]
    %v23 = vld [vmem:[%s0 + $0x4] sm:$0xf]
    %v24 = vld [vmem:[%s0 + $0x8] sm:$0xf]
    %v25 = vld [vmem:[%s0 + $0xc] sm:$0xf]
    %v26 = vld [vmem:[%s1] sm:$0xff]
    %v27 = vld [vmem:[%s1 + $0x8] sm:$0xff]
    %v28 = vld [vmem:[%s1 + $0x10] sm:$0xff]
    %v29 = vld [vmem:[%s1 + $0x18] sm:$0xff]
    %v30 = vld [vmem:[%s1 + $0x20] sm:$0xff]
    %v31 = vld [vmem:[%s1 + $0x28] sm:$0xff]
    %v32 = vld [vmem:[%s1 + $0x30] sm:$0xff]
    %v33 = vld [vmem:[%s1 + $0x38] sm:$0xff]
    %v34 = vld [vmem:[%s1 + $0x40] sm:$0xff]
    %v35 = vld [vmem:[%s1 + $0x48] sm:$0xff]
    %v36 = vld [vmem:[%s1 + $0x50] sm:$0xff]
    %v37 = vld [vmem:[%s1 + $0x58] sm:$0xff]
    %v38 = vld [vmem:[%s1 + $0x60] sm:$0xff]
    %v39 = vld [vmem:[%s1 + $0x68] sm:$0xff]
    %v40 = vld [vmem:[%s1 + $0x70] sm:$0xff]
    %v41 = vld [vmem:[%s1 + $0x78] sm:$0xff]
    %v42 = vld [vmem:[%s1 + $0x80] sm:$0xff]
    %v43 = vld [vmem:[%s1 + $0x88] sm:$0xff]
    %v44 = vld [vmem:[%s1 + $0x90] sm:$0xff]
    %v45 = vld [vmem:[%s1 + $0x98] sm:$0xff]
    %v46 = vld [vmem:[%s1 + $0xa0] sm:$0xff]
    %v47 = vld [vmem:[%s1 + $0xa8] sm:$0xff]
    %v48 = vld [vmem:[%s1 + $0xb0] sm:$0xff]
    %v49 = vld [vmem:[%s1 + $0xb8] sm:$0xff]
    %v50 = vld [vmem:[%s1 + $0xc0] sm:$0xff]
    %v51 = vld [vmem:[%s1 + $0xc8] sm:$0xff]
    %v52 = vld [vmem:[%s1 + $0xd0] sm:$0xff]
    %v53 = vld [vmem:[%s1 + $0xd8] sm:$0xff]
    %v54 = vld [vmem:[%s1 + $0xe0] sm:$0xff]
    %v55 = vld [vmem:[%s1 + $0xe8] sm:$0xff]
    %v56 = vld [vmem:[%s1 + $0xf0] sm:$0xff]
    %v57 = vld [vmem:[%s1 + $0xf8] sm:$0xff]
    %v58 = vld [vmem:[%s1 + $0x100] sm:$0xff]
    %v59 = vld [vmem:[%s1 + $0x108] sm:$0xff]
    %v60 = vld [vmem:[%s1 + $0x110] sm:$0xff]
    %v61 = vld [vmem:[%s1 + $0x118] sm:$0xff]
    %v62 = vld [vmem:[%s1 + $0x120] sm:$0xff]
    %v63 = vld [vmem:[%s1 + $0x128] sm:$0xff]
    %v64 = vld [vmem:[%s1 + $0x130] sm:$0xff]
    %v65 = vld [vmem:[%s1 + $0x138] sm:$0xff]
    %v66 = vld [vmem:[%s1 + $0x140] sm:$0xff]
    %v67 = vld [vmem:[%s1 + $0x148] sm:$0xff]
    %v68 = vld [vmem:[%s1 + $0x150] sm:$0xff]
    %v69 = vld [vmem:[%s1 + $0x158] sm:$0xff]
    %v70 = vld [vmem:[%s1 + $0x160] sm:$0xff]
    %v71 = vld [vmem:[%s1 + $0x168] sm:$0xff]
    %v72 = vld [vmem:[%s1 + $0x170] sm:$0xff]
    %v73 = vld [vmem:[%s1 + $0x178] sm:$0xff]
    %v74 = vld [vmem:[%s2] sm:$0xff]
    %v75 = vld [vmem:[%s2 + $0x8] sm:$0xf]
    %v78 = vlaneseq
    %v79 = vshrl.u32 %v78, 7
    %v80 = vsub.s32 0, %v79
    %v81 = vrot.slane %v74, %v80
    %v82 = vlaneseq
    %v83 = vshrl.u32 %v82, 7
    %v84 = vsub.s32 1, %v83
    %v85 = vrot.slane %v74, %v84
    %v86 = vlaneseq
    %v87 = vshrl.u32 %v86, 7
    %v88 = vsub.s32 2, %v87
    %v89 = vrot.slane %v74, %v88
    %v90 = vlaneseq
    %v91 = vshrl.u32 %v90, 7
    %v92 = vsub.s32 3, %v91
    %v93 = vrot.slane %v74, %v92
    %v94 = vlaneseq
    %v95 = vshrl.u32 %v94, 7
    %v96 = vsub.s32 4, %v95
    %v97 = vrot.slane %v74, %v96
    %v98 = vlaneseq
    %v99 = vshrl.u32 %v98, 7
    %v100 = vsub.s32 5, %v99
    %v101 = vrot.slane %v74, %v100
    %v102 = vlaneseq
    %v103 = vshrl.u32 %v102, 7
    %v104 = vsub.s32 6, %v103
    %v105 = vrot.slane %v74, %v104
    %v106 = vlaneseq
    %v107 = vshrl.u32 %v106, 7
    %v108 = vsub.s32 7, %v107
    %v109 = vrot.slane %v74, %v108
    %v110 = vlaneseq
    %v111 = vshrl.u32 %v110, 7
    %v112 = vsub.s32 0, %v111
    %v113 = vrot.slane %v75, %v112
    %v114 = vlaneseq
    %v115 = vshrl.u32 %v114, 7
    %v116 = vsub.s32 1, %v115
    %v117 = vrot.slane %v75, %v116
    %v118 = vlaneseq
    %v119 = vshrl.u32 %v118, 7
    %v120 = vsub.s32 2, %v119
    %v121 = vrot.slane %v75, %v120
    %v122 = vlaneseq
    %v123 = vshrl.u32 %v122, 7
    %v124 = vsub.s32 3, %v123
    %v125 = vrot.slane %v75, %v124
    %v142 = vunpack.c.l.b16 %v22
    %v143 = vunpack.c.l.b16 %v23
    %v144 = vunpack.c.l.b16 %v24
    %v145 = vunpack.c.l.b16 %v25
    %v146 = vpack.c.b16 %v143, %v142
    %v147 = vpack.c.b16 %v145, %v144
    %v196 = vunpack.c.l.b16 %v26
    %v197 = vunpack.c.h.b16 %v26
    %v198 = vunpack.c.l.b16 %v27
    %v199 = vunpack.c.h.b16 %v27
    %v200 = vunpack.c.l.b16 %v28
    %v201 = vunpack.c.h.b16 %v28
    %v202 = vunpack.c.l.b16 %v29
    %v203 = vunpack.c.h.b16 %v29
    %v204 = vunpack.c.l.b16 %v30
    %v205 = vunpack.c.h.b16 %v30
    %v206 = vunpack.c.l.b16 %v31
    %v207 = vunpack.c.h.b16 %v31
    %v208 = vunpack.c.l.b16 %v32
    %v209 = vunpack.c.h.b16 %v32
    %v210 = vunpack.c.l.b16 %v33
    %v211 = vunpack.c.h.b16 %v33
    %v212 = vunpack.c.l.b16 %v34
    %v213 = vunpack.c.h.b16 %v34
    %v214 = vunpack.c.l.b16 %v35
    %v215 = vunpack.c.h.b16 %v35
    %v216 = vunpack.c.l.b16 %v36
    %v217 = vunpack.c.h.b16 %v36
    %v218 = vunpack.c.l.b16 %v37
    %v219 = vunpack.c.h.b16 %v37
    %v220 = vunpack.c.l.b16 %v38
    %v221 = vunpack.c.h.b16 %v38
    %v222 = vunpack.c.l.b16 %v39
    %v223 = vunpack.c.h.b16 %v39
    %v224 = vunpack.c.l.b16 %v40
    %v225 = vunpack.c.h.b16 %v40
    %v226 = vunpack.c.l.b16 %v41
    %v227 = vunpack.c.h.b16 %v41
    %v228 = vunpack.c.l.b16 %v42
    %v229 = vunpack.c.h.b16 %v42
    %v230 = vunpack.c.l.b16 %v43
    %v231 = vunpack.c.h.b16 %v43
    %v232 = vunpack.c.l.b16 %v44
    %v233 = vunpack.c.h.b16 %v44
    %v234 = vunpack.c.l.b16 %v45
    %v235 = vunpack.c.h.b16 %v45
    %v236 = vunpack.c.l.b16 %v46
    %v237 = vunpack.c.h.b16 %v46
    %v238 = vunpack.c.l.b16 %v47
    %v239 = vunpack.c.h.b16 %v47
    %v240 = vunpack.c.l.b16 %v48
    %v241 = vunpack.c.h.b16 %v48
    %v242 = vunpack.c.l.b16 %v49
    %v243 = vunpack.c.h.b16 %v49
    %v244 = vunpack.c.l.b16 %v50
    %v245 = vunpack.c.h.b16 %v50
    %v246 = vunpack.c.l.b16 %v51
    %v247 = vunpack.c.h.b16 %v51
    %v248 = vunpack.c.l.b16 %v52
    %v249 = vunpack.c.h.b16 %v52
    %v250 = vunpack.c.l.b16 %v53
    %v251 = vunpack.c.h.b16 %v53
    %v252 = vunpack.c.l.b16 %v54
    %v253 = vunpack.c.h.b16 %v54
    %v254 = vunpack.c.l.b16 %v55
    %v255 = vunpack.c.h.b16 %v55
    %v256 = vunpack.c.l.b16 %v56
    %v257 = vunpack.c.h.b16 %v56
    %v258 = vunpack.c.l.b16 %v57
    %v259 = vunpack.c.h.b16 %v57
    %v260 = vunpack.c.l.b16 %v58
    %v261 = vunpack.c.h.b16 %v58
    %v262 = vunpack.c.l.b16 %v59
    %v263 = vunpack.c.h.b16 %v59
    %v264 = vunpack.c.l.b16 %v60
    %v265 = vunpack.c.h.b16 %v60
    %v266 = vunpack.c.l.b16 %v61
    %v267 = vunpack.c.h.b16 %v61
    %v268 = vunpack.c.l.b16 %v62
    %v269 = vunpack.c.h.b16 %v62
    %v270 = vunpack.c.l.b16 %v63
    %v271 = vunpack.c.h.b16 %v63
    %v272 = vunpack.c.l.b16 %v64
    %v273 = vunpack.c.h.b16 %v64
    %v274 = vunpack.c.l.b16 %v65
    %v275 = vunpack.c.h.b16 %v65
    %v276 = vunpack.c.l.b16 %v66
    %v277 = vunpack.c.h.b16 %v66
    %v278 = vunpack.c.l.b16 %v67
    %v279 = vunpack.c.h.b16 %v67
    %v280 = vunpack.c.l.b16 %v68
    %v281 = vunpack.c.h.b16 %v68
    %v282 = vunpack.c.l.b16 %v69
    %v283 = vunpack.c.h.b16 %v69
    %v284 = vunpack.c.l.b16 %v70
    %v285 = vunpack.c.h.b16 %v70
    %v286 = vunpack.c.l.b16 %v71
    %v287 = vunpack.c.h.b16 %v71
    %v288 = vunpack.c.l.b16 %v72
    %v289 = vunpack.c.h.b16 %v72
    %v290 = vunpack.c.l.b16 %v73
    %v291 = vunpack.c.h.b16 %v73
    %v292 = vpack.c.b16 %v208, %v196
    %v293 = vpack.c.b16 %v209, %v197
    %v294 = vpack.c.b16 %v210, %v198
    %v295 = vpack.c.b16 %v211, %v199
    %v296 = vpack.c.b16 %v212, %v200
    %v297 = vpack.c.b16 %v213, %v201
    %v298 = vpack.c.b16 %v214, %v202
    %v299 = vpack.c.b16 %v215, %v203
    %v300 = vpack.c.b16 %v216, %v204
    %v301 = vpack.c.b16 %v217, %v205
    %v302 = vpack.c.b16 %v218, %v206
    %v303 = vpack.c.b16 %v219, %v207
    %v304 = vpack.c.b16 %v232, %v220
    %v305 = vpack.c.b16 %v233, %v221
    %v306 = vpack.c.b16 %v234, %v222
    %v307 = vpack.c.b16 %v235, %v223
    %v308 = vpack.c.b16 %v236, %v224
    %v309 = vpack.c.b16 %v237, %v225
    %v310 = vpack.c.b16 %v238, %v226
    %v311 = vpack.c.b16 %v239, %v227
    %v312 = vpack.c.b16 %v240, %v228
    %v313 = vpack.c.b16 %v241, %v229
    %v314 = vpack.c.b16 %v242, %v230
    %v315 = vpack.c.b16 %v243, %v231
    %v316 = vpack.c.b16 %v256, %v244
    %v317 = vpack.c.b16 %v257, %v245
    %v318 = vpack.c.b16 %v258, %v246
    %v319 = vpack.c.b16 %v259, %v247
    %v320 = vpack.c.b16 %v260, %v248
    %v321 = vpack.c.b16 %v261, %v249
    %v322 = vpack.c.b16 %v262, %v250
    %v323 = vpack.c.b16 %v263, %v251
    %v324 = vpack.c.b16 %v264, %v252
    %v325 = vpack.c.b16 %v265, %v253
    %v326 = vpack.c.b16 %v266, %v254
    %v327 = vpack.c.b16 %v267, %v255
    %v328 = vpack.c.b16 %v280, %v268
    %v329 = vpack.c.b16 %v281, %v269
    %v330 = vpack.c.b16 %v282, %v270
    %v331 = vpack.c.b16 %v283, %v271
    %v332 = vpack.c.b16 %v284, %v272
    %v333 = vpack.c.b16 %v285, %v273
    %v334 = vpack.c.b16 %v286, %v274
    %v335 = vpack.c.b16 %v287, %v275
    %v336 = vpack.c.b16 %v288, %v276
    %v337 = vpack.c.b16 %v289, %v277
    %v338 = vpack.c.b16 %v290, %v278
    %v339 = vpack.c.b16 %v291, %v279
    %vm388 = vcmask 523264
    %v390 = vsel %vm388, %v146, 0
    %v393 = vsel %vm388, %v147, 0
    %395 = vmatprep.subr.bf16.mxu0 0
    %396 = vmatpush1.bf16.msra.mxu0 0
    %397 = vmatprep.subr.bf16.mxu0 0
    %398 = vmatpush1.bf16.msra.mxu0 0
    %399 = vmatprep.subr.bf16.mxu0 0
    %400 = vmatpush1.bf16.msra.mxu0 0
    %401 = vmatprep.subr.bf16.mxu0 0
    %402 = vmatpush1.bf16.msra.mxu0 0
    %403 = vmatprep.subr.bf16.mxu0 %v329
    %404 = vmatpush1.bf16.msra.mxu0 %v328
    %405 = vmatprep.subr.bf16.mxu0 %v317
    %406 = vmatpush1.bf16.msra.mxu0 %v316
    %407 = vmatprep.subr.bf16.mxu0 %v305
    %408 = vmatpush1.bf16.msra.mxu0 %v304
    %409 = vmatprep.subr.bf16.mxu0 %v293
    %410 = vmatpush1.bf16.msra.mxu0 %v292
    %411 = vmatprep.subr.bf16.mxu0 0
    %412 = vmatpush2.bf16.msra.mxu0 0
    %413 = vmatprep.subr.bf16.mxu0 0
    %414 = vmatpush2.bf16.msra.mxu0 0
    %415 = vmatprep.subr.bf16.mxu0 0
    %416 = vmatpush2.bf16.msra.mxu0 0
    %417 = vmatprep.subr.bf16.mxu0 0
    %418 = vmatpush2.bf16.msra.mxu0 0
    %419 = vmatprep.subr.bf16.mxu0 0
    %420 = vmatpush2.bf16.msra.mxu0 0
    %421 = vmatprep.subr.bf16.mxu0 0
    %422 = vmatpush2.bf16.msra.mxu0 0
    %423 = vmatprep.subr.bf16.mxu0 0
    %424 = vmatpush2.bf16.msra.mxu0 0
    %425 = vmatprep.subr.bf16.mxu0 0
    %426 = vmatpush2.bf16.msra.mxu0 0
    %427 = vmatprep.mubr.bf16.mxu0 0
    %428 = vmatmul.mubr.bf16.gmra.mxu0 %v390
    %v429 = vpop.f32.mrf.mxu0
    %v430 = vadd.f32 %v81, %v429
    %v431 = vpop.f32.mrf.mxu0
    %v432 = vadd.f32 %v85, %v431
    %v433 = vpop.f32.mrf.mxu0
    %v434 = vadd.f32 %v81, %v433
    %v435 = vpop.f32.mrf.mxu0
    %v436 = vadd.f32 %v85, %v435
    %437 = vmatprep.mubr.bf16.mxu0 0
    %438 = vmatmul.mubr.bf16.gmra.mxu0 %v393
    %v439 = vpop.f32.mrf.mxu0
    %v440 = vadd.f32 %v81, %v439
    %v441 = vpop.f32.mrf.mxu0
    %v442 = vadd.f32 %v85, %v441
    %v443 = vpop.f32.mrf.mxu0
    %v444 = vadd.f32 %v81, %v443
    %v445 = vpop.f32.mrf.mxu0
    %v446 = vadd.f32 %v85, %v445
    %447 = vdwg.mxu0
    %448 = vmatprep.subr.bf16.mxu0 0
    %449 = vmatpush1.bf16.msra.mxu0 0
    %450 = vmatprep.subr.bf16.mxu0 0
    %451 = vmatpush1.bf16.msra.mxu0 0
    %452 = vmatprep.subr.bf16.mxu0 0
    %453 = vmatpush1.bf16.msra.mxu0 0
    %454 = vmatprep.subr.bf16.mxu0 0
    %455 = vmatpush1.bf16.msra.mxu0 0
    %456 = vmatprep.subr.bf16.mxu0 %v331
    %457 = vmatpush1.bf16.msra.mxu0 %v330
    %458 = vmatprep.subr.bf16.mxu0 %v319
    %459 = vmatpush1.bf16.msra.mxu0 %v318
    %460 = vmatprep.subr.bf16.mxu0 %v307
    %461 = vmatpush1.bf16.msra.mxu0 %v306
    %462 = vmatprep.subr.bf16.mxu0 %v295
    %463 = vmatpush1.bf16.msra.mxu0 %v294
    %464 = vmatprep.subr.bf16.mxu0 0
    %465 = vmatpush2.bf16.msra.mxu0 0
    %466 = vmatprep.subr.bf16.mxu0 0
    %467 = vmatpush2.bf16.msra.mxu0 0
    %468 = vmatprep.subr.bf16.mxu0 0
    %469 = vmatpush2.bf16.msra.mxu0 0
    %470 = vmatprep.subr.bf16.mxu0 0
    %471 = vmatpush2.bf16.msra.mxu0 0
    %472 = vmatprep.subr.bf16.mxu0 0
    %473 = vmatpush2.bf16.msra.mxu0 0
    %474 = vmatprep.subr.bf16.mxu0 0
    %475 = vmatpush2.bf16.msra.mxu0 0
    %476 = vmatprep.subr.bf16.mxu0 0
    %477 = vmatpush2.bf16.msra.mxu0 0
    %478 = vmatprep.subr.bf16.mxu0 0
    %479 = vmatpush2.bf16.msra.mxu0 0
    %480 = vmatprep.mubr.bf16.mxu0 0
    %481 = vmatmul.mubr.bf16.gmra.mxu0 %v390
    %v482 = vpop.f32.mrf.mxu0
    %v483 = vadd.f32 %v89, %v482
    %v484 = vpop.f32.mrf.mxu0
    %v485 = vadd.f32 %v93, %v484
    %v486 = vpop.f32.mrf.mxu0
    %v487 = vadd.f32 %v89, %v486
    %v488 = vpop.f32.mrf.mxu0
    %v489 = vadd.f32 %v93, %v488
    %490 = vmatprep.mubr.bf16.mxu0 0
    %491 = vmatmul.mubr.bf16.gmra.mxu0 %v393
    %v492 = vpop.f32.mrf.mxu0
    %v493 = vadd.f32 %v89, %v492
    %v494 = vpop.f32.mrf.mxu0
    %v495 = vadd.f32 %v93, %v494
    %v496 = vpop.f32.mrf.mxu0
    %v497 = vadd.f32 %v89, %v496
    %v498 = vpop.f32.mrf.mxu0
    %v499 = vadd.f32 %v93, %v498
    %500 = vdwg.mxu0
    %501 = vmatprep.subr.bf16.mxu0 0
    %502 = vmatpush1.bf16.msra.mxu0 0
    %503 = vmatprep.subr.bf16.mxu0 0
    %504 = vmatpush1.bf16.msra.mxu0 0
    %505 = vmatprep.subr.bf16.mxu0 0
    %506 = vmatpush1.bf16.msra.mxu0 0
    %507 = vmatprep.subr.bf16.mxu0 0
    %508 = vmatpush1.bf16.msra.mxu0 0
    %509 = vmatprep.subr.bf16.mxu0 %v333
    %510 = vmatpush1.bf16.msra.mxu0 %v332
    %511 = vmatprep.subr.bf16.mxu0 %v321
    %512 = vmatpush1.bf16.msra.mxu0 %v320
    %513 = vmatprep.subr.bf16.mxu0 %v309
    %514 = vmatpush1.bf16.msra.mxu0 %v308
    %515 = vmatprep.subr.bf16.mxu0 %v297
    %516 = vmatpush1.bf16.msra.mxu0 %v296
    %517 = vmatprep.subr.bf16.mxu0 0
    %518 = vmatpush2.bf16.msra.mxu0 0
    %519 = vmatprep.subr.bf16.mxu0 0
    %520 = vmatpush2.bf16.msra.mxu0 0
    %521 = vmatprep.subr.bf16.mxu0 0
    %522 = vmatpush2.bf16.msra.mxu0 0
    %523 = vmatprep.subr.bf16.mxu0 0
    %524 = vmatpush2.bf16.msra.mxu0 0
    %525 = vmatprep.subr.bf16.mxu0 0
    %526 = vmatpush2.bf16.msra.mxu0 0
    %527 = vmatprep.subr.bf16.mxu0 0
    %528 = vmatpush2.bf16.msra.mxu0 0
    %529 = vmatprep.subr.bf16.mxu0 0
    %530 = vmatpush2.bf16.msra.mxu0 0
    %531 = vmatprep.subr.bf16.mxu0 0
    %532 = vmatpush2.bf16.msra.mxu0 0
    %533 = vmatprep.mubr.bf16.mxu0 0
    %534 = vmatmul.mubr.bf16.gmra.mxu0 %v390
    %v535 = vpop.f32.mrf.mxu0
    %v536 = vadd.f32 %v97, %v535
    %v537 = vpop.f32.mrf.mxu0
    %v538 = vadd.f32 %v101, %v537
    %v539 = vpop.f32.mrf.mxu0
    %v540 = vadd.f32 %v97, %v539
    %v541 = vpop.f32.mrf.mxu0
    %v542 = vadd.f32 %v101, %v541
    %543 = vmatprep.mubr.bf16.mxu0 0
    %544 = vmatmul.mubr.bf16.gmra.mxu0 %v393
    %v545 = vpop.f32.mrf.mxu0
    %v546 = vadd.f32 %v97, %v545
    %v547 = vpop.f32.mrf.mxu0
    %v548 = vadd.f32 %v101, %v547
    %v549 = vpop.f32.mrf.mxu0
    %v550 = vadd.f32 %v97, %v549
    %v551 = vpop.f32.mrf.mxu0
    %v552 = vadd.f32 %v101, %v551
    %553 = vdwg.mxu0
    %554 = vmatprep.subr.bf16.mxu0 0
    %555 = vmatpush1.bf16.msra.mxu0 0
    %556 = vmatprep.subr.bf16.mxu0 0
    %557 = vmatpush1.bf16.msra.mxu0 0
    %558 = vmatprep.subr.bf16.mxu0 0
    %559 = vmatpush1.bf16.msra.mxu0 0
    %560 = vmatprep.subr.bf16.mxu0 0
    %561 = vmatpush1.bf16.msra.mxu0 0
    %562 = vmatprep.subr.bf16.mxu0 %v335
    %563 = vmatpush1.bf16.msra.mxu0 %v334
    %564 = vmatprep.subr.bf16.mxu0 %v323
    %565 = vmatpush1.bf16.msra.mxu0 %v322
    %566 = vmatprep.subr.bf16.mxu0 %v311
    %567 = vmatpush1.bf16.msra.mxu0 %v310
    %568 = vmatprep.subr.bf16.mxu0 %v299
    %569 = vmatpush1.bf16.msra.mxu0 %v298
    %570 = vmatprep.subr.bf16.mxu0 0
    %571 = vmatpush2.bf16.msra.mxu0 0
    %572 = vmatprep.subr.bf16.mxu0 0
    %573 = vmatpush2.bf16.msra.mxu0 0
    %574 = vmatprep.subr.bf16.mxu0 0
    %575 = vmatpush2.bf16.msra.mxu0 0
    %576 = vmatprep.subr.bf16.mxu0 0
    %577 = vmatpush2.bf16.msra.mxu0 0
    %578 = vmatprep.subr.bf16.mxu0 0
    %579 = vmatpush2.bf16.msra.mxu0 0
    %580 = vmatprep.subr.bf16.mxu0 0
    %581 = vmatpush2.bf16.msra.mxu0 0
    %582 = vmatprep.subr.bf16.mxu0 0
    %583 = vmatpush2.bf16.msra.mxu0 0
    %584 = vmatprep.subr.bf16.mxu0 0
    %585 = vmatpush2.bf16.msra.mxu0 0
    %586 = vmatprep.mubr.bf16.mxu0 0
    %587 = vmatmul.mubr.bf16.gmra.mxu0 %v390
    %v588 = vpop.f32.mrf.mxu0
    %v589 = vadd.f32 %v105, %v588
    %v590 = vpop.f32.mrf.mxu0
    %v591 = vadd.f32 %v109, %v590
    %v592 = vpop.f32.mrf.mxu0
    %v593 = vadd.f32 %v105, %v592
    %v594 = vpop.f32.mrf.mxu0
    %v595 = vadd.f32 %v109, %v594
    %596 = vmatprep.mubr.bf16.mxu0 0
    %597 = vmatmul.mubr.bf16.gmra.mxu0 %v393
    %v598 = vpop.f32.mrf.mxu0
    %v599 = vadd.f32 %v105, %v598
    %v600 = vpop.f32.mrf.mxu0
    %v601 = vadd.f32 %v109, %v600
    %v602 = vpop.f32.mrf.mxu0
    %v603 = vadd.f32 %v105, %v602
    %v604 = vpop.f32.mrf.mxu0
    %v605 = vadd.f32 %v109, %v604
    %606 = vdwg.mxu0
    %607 = vmatprep.subr.bf16.mxu0 0
    %608 = vmatpush1.bf16.msra.mxu0 0
    %609 = vmatprep.subr.bf16.mxu0 0
    %610 = vmatpush1.bf16.msra.mxu0 0
    %611 = vmatprep.subr.bf16.mxu0 0
    %612 = vmatpush1.bf16.msra.mxu0 0
    %613 = vmatprep.subr.bf16.mxu0 0
    %614 = vmatpush1.bf16.msra.mxu0 0
    %615 = vmatprep.subr.bf16.mxu0 %v337
    %616 = vmatpush1.bf16.msra.mxu0 %v336
    %617 = vmatprep.subr.bf16.mxu0 %v325
    %618 = vmatpush1.bf16.msra.mxu0 %v324
    %619 = vmatprep.subr.bf16.mxu0 %v313
    %620 = vmatpush1.bf16.msra.mxu0 %v312
    %621 = vmatprep.subr.bf16.mxu0 %v301
    %622 = vmatpush1.bf16.msra.mxu0 %v300
    %623 = vmatprep.subr.bf16.mxu0 0
    %624 = vmatpush2.bf16.msra.mxu0 0
    %625 = vmatprep.subr.bf16.mxu0 0
    %626 = vmatpush2.bf16.msra.mxu0 0
    %627 = vmatprep.subr.bf16.mxu0 0
    %628 = vmatpush2.bf16.msra.mxu0 0
    %629 = vmatprep.subr.bf16.mxu0 0
    %630 = vmatpush2.bf16.msra.mxu0 0
    %631 = vmatprep.subr.bf16.mxu0 0
    %632 = vmatpush2.bf16.msra.mxu0 0
    %633 = vmatprep.subr.bf16.mxu0 0
    %634 = vmatpush2.bf16.msra.mxu0 0
    %635 = vmatprep.subr.bf16.mxu0 0
    %636 = vmatpush2.bf16.msra.mxu0 0
    %637 = vmatprep.subr.bf16.mxu0 0
    %638 = vmatpush2.bf16.msra.mxu0 0
    %639 = vmatprep.mubr.bf16.mxu0 0
    %640 = vmatmul.mubr.bf16.gmra.mxu0 %v390
    %v641 = vpop.f32.mrf.mxu0
    %v642 = vadd.f32 %v113, %v641
    %v643 = vpop.f32.mrf.mxu0
    %v644 = vadd.f32 %v117, %v643
    %v645 = vpop.f32.mrf.mxu0
    %v646 = vadd.f32 %v113, %v645
    %v647 = vpop.f32.mrf.mxu0
    %v648 = vadd.f32 %v117, %v647
    %649 = vmatprep.mubr.bf16.mxu0 0
    %650 = vmatmul.mubr.bf16.gmra.mxu0 %v393
    %v651 = vpop.f32.mrf.mxu0
    %v652 = vadd.f32 %v113, %v651
    %v653 = vpop.f32.mrf.mxu0
    %v654 = vadd.f32 %v117, %v653
    %v655 = vpop.f32.mrf.mxu0
    %v656 = vadd.f32 %v113, %v655
    %v657 = vpop.f32.mrf.mxu0
    %v658 = vadd.f32 %v117, %v657
    %659 = vdwg.mxu0
    %660 = vmatprep.subr.bf16.mxu0 0
    %661 = vmatpush1.bf16.msra.mxu0 0
    %662 = vmatprep.subr.bf16.mxu0 0
    %663 = vmatpush1.bf16.msra.mxu0 0
    %664 = vmatprep.subr.bf16.mxu0 0
    %665 = vmatpush1.bf16.msra.mxu0 0
    %666 = vmatprep.subr.bf16.mxu0 0
    %667 = vmatpush1.bf16.msra.mxu0 0
    %668 = vmatprep.subr.bf16.mxu0 %v339
    %669 = vmatpush1.bf16.msra.mxu0 %v338
    %670 = vmatprep.subr.bf16.mxu0 %v327
    %671 = vmatpush1.bf16.msra.mxu0 %v326
    %672 = vmatprep.subr.bf16.mxu0 %v315
    %673 = vmatpush1.bf16.msra.mxu0 %v314
    %674 = vmatprep.subr.bf16.mxu0 %v303
    %675 = vmatpush1.bf16.msra.mxu0 %v302
    %676 = vmatprep.subr.bf16.mxu0 0
    %677 = vmatpush2.bf16.msra.mxu0 0
    %678 = vmatprep.subr.bf16.mxu0 0
    %679 = vmatpush2.bf16.msra.mxu0 0
    %680 = vmatprep.subr.bf16.mxu0 0
    %681 = vmatpush2.bf16.msra.mxu0 0
    %682 = vmatprep.subr.bf16.mxu0 0
    %683 = vmatpush2.bf16.msra.mxu0 0
    %684 = vmatprep.subr.bf16.mxu0 0
    %685 = vmatpush2.bf16.msra.mxu0 0
    %686 = vmatprep.subr.bf16.mxu0 0
    %687 = vmatpush2.bf16.msra.mxu0 0
    %688 = vmatprep.subr.bf16.mxu0 0
    %689 = vmatpush2.bf16.msra.mxu0 0
    %690 = vmatprep.subr.bf16.mxu0 0
    %691 = vmatpush2.bf16.msra.mxu0 0
    %692 = vmatprep.mubr.bf16.mxu0 0
    %693 = vmatmul.mubr.bf16.gmra.mxu0 %v390
    %v694 = vpop.f32.mrf.mxu0
    %v695 = vadd.f32 %v121, %v694
    %v696 = vpop.f32.mrf.mxu0
    %v697 = vadd.f32 %v125, %v696
    %v698 = vpop.f32.mrf.mxu0
    %v699 = vadd.f32 %v121, %v698
    %v700 = vpop.f32.mrf.mxu0
    %v701 = vadd.f32 %v125, %v700
    %702 = vmatprep.mubr.bf16.mxu0 0
    %703 = vmatmul.mubr.bf16.gmra.mxu0 %v393
    %v704 = vpop.f32.mrf.mxu0
    %v705 = vadd.f32 %v121, %v704
    %v706 = vpop.f32.mrf.mxu0
    %v707 = vadd.f32 %v125, %v706
    %v708 = vpop.f32.mrf.mxu0
    %v709 = vadd.f32 %v121, %v708
    %v710 = vpop.f32.mrf.mxu0
    %v711 = vadd.f32 %v125, %v710
    %712 = vdwg.mxu0
    %v713 = vpack.c.bf16 %v434, %v430
    %v714 = vpack.c.bf16 %v436, %v432
    %v715 = vpack.c.bf16 %v487, %v483
    %v716 = vpack.c.bf16 %v489, %v485
    %v717 = vpack.c.bf16 %v540, %v536
    %v718 = vpack.c.bf16 %v542, %v538
    %v719 = vpack.c.bf16 %v593, %v589
    %v720 = vpack.c.bf16 %v595, %v591
    %v721 = vpack.c.bf16 %v646, %v642
    %v722 = vpack.c.bf16 %v648, %v644
    %v723 = vpack.c.bf16 %v699, %v695
    %v724 = vpack.c.bf16 %v701, %v697
    %v725 = vpack.c.bf16 %v444, %v440
    %v726 = vpack.c.bf16 %v446, %v442
    %v727 = vpack.c.bf16 %v497, %v493
    %v728 = vpack.c.bf16 %v499, %v495
    %v729 = vpack.c.bf16 %v550, %v546
    %v730 = vpack.c.bf16 %v552, %v548
    %v731 = vpack.c.bf16 %v603, %v599
    %v732 = vpack.c.bf16 %v605, %v601
    %v733 = vpack.c.bf16 %v656, %v652
    %v734 = vpack.c.bf16 %v658, %v654
    %v735 = vpack.c.bf16 %v709, %v705
    %v736 = vpack.c.bf16 %v711, %v707
    %v737 = vld [vmem:[%s3] sm:$0xf]
    %v738 = vld [vmem:[%s3 + $0x4] sm:$0xf]
    %v739 = vld [vmem:[%s3 + $0x8] sm:$0xf]
    %v740 = vld [vmem:[%s3 + $0xc] sm:$0xf]
    %v741 = vld [vmem:[%s3 + $0x10] sm:$0xf]
    %v742 = vld [vmem:[%s3 + $0x14] sm:$0xf]
    %v743 = vld [vmem:[%s3 + $0x18] sm:$0xf]
    %v744 = vld [vmem:[%s3 + $0x1c] sm:$0xf]
    %v745 = vld [vmem:[%s3 + $0x20] sm:$0xf]
    %v746 = vld [vmem:[%s3 + $0x24] sm:$0xf]
    %v747 = vld [vmem:[%s3 + $0x28] sm:$0xf]
    %v748 = vld [vmem:[%s3 + $0x2c] sm:$0xf]
    %v749 = vld [vmem:[%s3 + $0x30] sm:$0xf]
    %v750 = vld [vmem:[%s3 + $0x34] sm:$0xf]
    %v751 = vld [vmem:[%s3 + $0x38] sm:$0xf]
    %v752 = vld [vmem:[%s3 + $0x3c] sm:$0xf]
    %v753 = vld [vmem:[%s3 + $0x40] sm:$0xf]
    %v754 = vld [vmem:[%s3 + $0x44] sm:$0xf]
    %v755 = vld [vmem:[%s3 + $0x48] sm:$0xf]
    %v756 = vld [vmem:[%s3 + $0x4c] sm:$0xf]
    %v757 = vld [vmem:[%s3 + $0x50] sm:$0xf]
    %v758 = vld [vmem:[%s3 + $0x54] sm:$0xf]
    %v759 = vld [vmem:[%s3 + $0x58] sm:$0xf]
    %v760 = vld [vmem:[%s3 + $0x5c] sm:$0xf]
    %v761 = vld [vmem:[%s3 + $0x60] sm:$0xf]
    %v762 = vld [vmem:[%s3 + $0x64] sm:$0xf]
    %v763 = vld [vmem:[%s3 + $0x68] sm:$0xf]
    %v764 = vld [vmem:[%s3 + $0x6c] sm:$0xf]
    %v765 = vld [vmem:[%s3 + $0x70] sm:$0xf]
    %v766 = vld [vmem:[%s3 + $0x74] sm:$0xf]
    %v767 = vld [vmem:[%s3 + $0x78] sm:$0xf]
    %v768 = vld [vmem:[%s3 + $0x7c] sm:$0xf]
    %v769 = vld [vmem:[%s3 + $0x80] sm:$0xf]
    %v770 = vld [vmem:[%s3 + $0x84] sm:$0xf]
    %v771 = vld [vmem:[%s3 + $0x88] sm:$0xf]
    %v772 = vld [vmem:[%s3 + $0x8c] sm:$0xf]
    %v773 = vld [vmem:[%s3 + $0x90] sm:$0xf]
    %v774 = vld [vmem:[%s3 + $0x94] sm:$0xf]
    %v775 = vld [vmem:[%s3 + $0x98] sm:$0xf]
    %v776 = vld [vmem:[%s3 + $0x9c] sm:$0xf]
    %v777 = vld [vmem:[%s3 + $0xa0] sm:$0xf]
    %v778 = vld [vmem:[%s3 + $0xa4] sm:$0xf]
    %v779 = vld [vmem:[%s3 + $0xa8] sm:$0xf]
    %v780 = vld [vmem:[%s3 + $0xac] sm:$0xf]
    %v781 = vld [vmem:[%s3 + $0xb0] sm:$0xf]
    %v782 = vld [vmem:[%s3 + $0xb4] sm:$0xf]
    %v783 = vld [vmem:[%s3 + $0xb8] sm:$0xf]
    %v784 = vld [vmem:[%s3 + $0xbc] sm:$0xf]
    %v785 = vld [vmem:[%s3 + $0xc0] sm:$0xf]
    %v786 = vld [vmem:[%s3 + $0xc4] sm:$0xf]
    %v787 = vld [vmem:[%s3 + $0xc8] sm:$0xf]
    %v788 = vld [vmem:[%s3 + $0xcc] sm:$0xf]
    %v789 = vld [vmem:[%s3 + $0xd0] sm:$0xf]
    %v790 = vld [vmem:[%s3 + $0xd4] sm:$0xf]
    %v791 = vld [vmem:[%s3 + $0xd8] sm:$0xf]
    %v792 = vld [vmem:[%s3 + $0xdc] sm:$0xf]
    %v793 = vld [vmem:[%s3 + $0xe0] sm:$0xf]
    %v794 = vld [vmem:[%s3 + $0xe4] sm:$0xf]
    %v795 = vld [vmem:[%s3 + $0xe8] sm:$0xf]
    %v796 = vld [vmem:[%s3 + $0xec] sm:$0xf]
    %v797 = vld [vmem:[%s3 + $0xf0] sm:$0xf]
    %v798 = vld [vmem:[%s3 + $0xf4] sm:$0xf]
    %v799 = vld [vmem:[%s3 + $0xf8] sm:$0xf]
    %v800 = vld [vmem:[%s3 + $0xfc] sm:$0xf]
    %v801 = vld [vmem:[%s4] sm:$0x1]
    %802 = vmatprep.subr.bf16.mxu0 0
    %803 = vmatpush1.bf16.xpose.msra.mxu0 0
    %804 = vmatprep.subr.bf16.mxu0 0
    %805 = vmatpush1.bf16.xpose.msra.mxu0 0
    %806 = vmatprep.subr.bf16.mxu0 0
    %807 = vmatpush1.bf16.xpose.msra.mxu0 0
    %808 = vmatprep.subr.bf16.mxu0 0
    %809 = vmatpush1.bf16.xpose.msra.mxu0 0
    %810 = vmatprep.subr.bf16.mxu0 0
    %811 = vmatpush1.bf16.xpose.msra.mxu0 0
    %812 = vmatprep.subr.bf16.mxu0 0
    %813 = vmatpush1.bf16.xpose.msra.mxu0 0
    %814 = vmatprep.subr.bf16.mxu0 0
    %815 = vmatpush1.bf16.xpose.msra.mxu0 0
    %816 = vmatprep.subr.bf16.mxu0 0
    %817 = vmatpush1.bf16.xpose.msra.mxu0 %v714
    %818 = vmatprep.subr.bf16.mxu0 0
    %819 = vmatpush2.bf16.xpose.msra.mxu0 0
    %820 = vmatprep.subr.bf16.mxu0 0
    %821 = vmatpush2.bf16.xpose.msra.mxu0 0
    %822 = vmatprep.subr.bf16.mxu0 0
    %823 = vmatpush2.bf16.xpose.msra.mxu0 0
    %824 = vmatprep.subr.bf16.mxu0 0
    %825 = vmatpush2.bf16.xpose.msra.mxu0 0
    %826 = vmatprep.subr.bf16.mxu0 0
    %827 = vmatpush2.bf16.xpose.msra.mxu0 0
    %828 = vmatprep.subr.bf16.mxu0 0
    %829 = vmatpush2.bf16.xpose.msra.mxu0 0
    %830 = vmatprep.subr.bf16.mxu0 0
    %831 = vmatpush2.bf16.xpose.msra.mxu0 0
    %832 = vmatprep.subr.bf16.mxu0 0
    %833 = vmatpush2.bf16.xpose.msra.mxu0 0
    %834 = vmatprep.mubr.bf16.mxu0 0
    %835 = vmatmul.mubr.bf16.gmra.mxu0 %v713
    %v836 = vpop.f32.mrf.mxu0
    %v837 = vadd.f32 0.0, %v836
    %v838 = vpop.f32.mrf.mxu0
    %v839 = vpop.f32.mrf.mxu0
    %v840 = vadd.f32 0.0, %v839
    %v841 = vpop.f32.mrf.mxu0
    %842 = vdwg.mxu0
    %vm843 = vcmask 130048
    %v844 = vsel %vm843, %v837, -inf
    %845 = vmax.xlane.f32.xlu0 %v844
    %v846 = vpop.xlane.xlu0 %845
    %v847 = vsel %vm843, %v840, -inf
    %848 = vmax.xlane.f32.xlu0 %v847
    %v849 = vpop.xlane.xlu0 %848
    %v850 = vsub.f32 %v837, %v846
    %v851 = vsub.f32 %v840, %v849
    %v852 = vmul.f32 %v850, 1.442695
    %v853 = vpow.pop %v852
    %v854 = vmul.f32 %v851, 1.442695
    %v855 = vpow.pop %v854
    %v856 = vsel %vm843, %v853, 0.0
    %857 = vadd.xlane.f32.xlu0 %v856
    %v858 = vpop.xlane.xlu0 %857
    %v859 = vsel %vm843, %v855, 0.0
    %860 = vadd.xlane.f32.xlu0 %v859
    %v861 = vpop.xlane.xlu0 %860
    %v862 = vrcp.pop %v858
    %v863 = vmul.f32 %v853, %v862
    %v864 = vrcp.pop %v861
    %v865 = vmul.f32 %v855, %v864
    %v866 = vpack.c.bf16 %v865, %v863
    %v868 = vsel %vm843, %v866, 0
    %870 = vmatprep.subr.bf16.mxu0 0
    %871 = vmatpush1.bf16.msra.mxu0 0
    %872 = vmatprep.subr.bf16.mxu0 0
    %873 = vmatpush1.bf16.msra.mxu0 0
    %874 = vmatprep.subr.bf16.mxu0 0
    %875 = vmatpush1.bf16.msra.mxu0 0
    %876 = vmatprep.subr.bf16.mxu0 0
    %877 = vmatpush1.bf16.msra.mxu0 0
    %878 = vmatprep.subr.bf16.mxu0 0
    %879 = vmatpush1.bf16.msra.mxu0 0
    %880 = vmatprep.subr.bf16.mxu0 0
    %881 = vmatpush1.bf16.msra.mxu0 0
    %882 = vmatprep.subr.bf16.mxu0 0
    %883 = vmatpush1.bf16.msra.mxu0 0
    %884 = vmatprep.subr.bf16.mxu0 0
    %885 = vmatpush1.bf16.msra.mxu0 %v715
    %886 = vmatprep.subr.bf16.mxu0 0
    %887 = vmatpush2.bf16.msra.mxu0 0
    %888 = vmatprep.subr.bf16.mxu0 0
    %889 = vmatpush2.bf16.msra.mxu0 0
    %890 = vmatprep.subr.bf16.mxu0 0
    %891 = vmatpush2.bf16.msra.mxu0 0
    %892 = vmatprep.subr.bf16.mxu0 0
    %893 = vmatpush2.bf16.msra.mxu0 0
    %894 = vmatprep.subr.bf16.mxu0 0
    %895 = vmatpush2.bf16.msra.mxu0 0
    %896 = vmatprep.subr.bf16.mxu0 0
    %897 = vmatpush2.bf16.msra.mxu0 0
    %898 = vmatprep.subr.bf16.mxu0 0
    %899 = vmatpush2.bf16.msra.mxu0 0
    %900 = vmatprep.subr.bf16.mxu0 0
    %901 = vmatpush2.bf16.msra.mxu0 0
    %902 = vmatprep.mubr.bf16.mxu0 0
    %903 = vmatmul.mubr.bf16.gmra.mxu0 %v868
    %v904 = vpop.f32.mrf.mxu0
    %v905 = vadd.f32 0.0, %v904
    %v906 = vpop.f32.mrf.mxu0
    %v907 = vpop.f32.mrf.mxu0
    %v908 = vadd.f32 0.0, %v907
    %v909 = vpop.f32.mrf.mxu0
    %910 = vdwg.mxu0
    %v911 = vpack.c.bf16 %v908, %v905
    %912 = vmatprep.subr.bf16.mxu0 0
    %913 = vmatpush1.bf16.xpose.msra.mxu0 0
    %914 = vmatprep.subr.bf16.mxu0 0
    %915 = vmatpush1.bf16.xpose.msra.mxu0 0
    %916 = vmatprep.subr.bf16.mxu0 0
    %917 = vmatpush1.bf16.xpose.msra.mxu0 0
    %918 = vmatprep.subr.bf16.mxu0 0
    %919 = vmatpush1.bf16.xpose.msra.mxu0 0
    %920 = vmatprep.subr.bf16.mxu0 0
    %921 = vmatpush1.bf16.xpose.msra.mxu0 0
    %922 = vmatprep.subr.bf16.mxu0 0
    %923 = vmatpush1.bf16.xpose.msra.mxu0 0
    %924 = vmatprep.subr.bf16.mxu0 0
    %925 = vmatpush1.bf16.xpose.msra.mxu0 0
    %926 = vmatprep.subr.bf16.mxu0 0
    %927 = vmatpush1.bf16.xpose.msra.mxu0 %v717
    %928 = vmatprep.subr.bf16.mxu0 0
    %929 = vmatpush2.bf16.xpose.msra.mxu0 0
    %930 = vmatprep.subr.bf16.mxu0 0
    %931 = vmatpush2.bf16.xpose.msra.mxu0 0
    %932 = vmatprep.subr.bf16.mxu0 0
    %933 = vmatpush2.bf16.xpose.msra.mxu0 0
    %934 = vmatprep.subr.bf16.mxu0 0
    %935 = vmatpush2.bf16.xpose.msra.mxu0 0
    %936 = vmatprep.subr.bf16.mxu0 0
    %937 = vmatpush2.bf16.xpose.msra.mxu0 0
    %938 = vmatprep.subr.bf16.mxu0 0
    %939 = vmatpush2.bf16.xpose.msra.mxu0 0
    %940 = vmatprep.subr.bf16.mxu0 0
    %941 = vmatpush2.bf16.xpose.msra.mxu0 0
    %942 = vmatprep.subr.bf16.mxu0 0
    %943 = vmatpush2.bf16.xpose.msra.mxu0 0
    %944 = vmatprep.mubr.bf16.mxu0 0
    %945 = vmatmul.mubr.bf16.gmra.mxu0 %v716
    %v946 = vpop.f32.mrf.mxu0
    %v947 = vadd.f32 0.0, %v946
    %v948 = vpop.f32.mrf.mxu0
    %v949 = vpop.f32.mrf.mxu0
    %v950 = vadd.f32 0.0, %v949
    %v951 = vpop.f32.mrf.mxu0
    %952 = vdwg.mxu0
    %v953 = vsel %vm843, %v947, -inf
    %954 = vmax.xlane.f32.xlu0 %v953
    %v955 = vpop.xlane.xlu0 %954
    %v956 = vsel %vm843, %v950, -inf
    %957 = vmax.xlane.f32.xlu0 %v956
    %v958 = vpop.xlane.xlu0 %957
    %v959 = vsub.f32 %v947, %v955
    %v960 = vsub.f32 %v950, %v958
    %v961 = vmul.f32 %v959, 1.442695
    %v962 = vpow.pop %v961
    %v963 = vmul.f32 %v960, 1.442695
    %v964 = vpow.pop %v963
    %v965 = vsel %vm843, %v962, 0.0
    %966 = vadd.xlane.f32.xlu0 %v965
    %v967 = vpop.xlane.xlu0 %966
    %v968 = vsel %vm843, %v964, 0.0
    %969 = vadd.xlane.f32.xlu0 %v968
    %v970 = vpop.xlane.xlu0 %969
    %v971 = vrcp.pop %v967
    %v972 = vmul.f32 %v962, %v971
    %v973 = vrcp.pop %v970
    %v974 = vmul.f32 %v964, %v973
    %v975 = vpack.c.bf16 %v974, %v972
    %v977 = vsel %vm843, %v975, 0
    %979 = vmatprep.subr.bf16.mxu0 0
    %980 = vmatpush1.bf16.msra.mxu0 0
    %981 = vmatprep.subr.bf16.mxu0 0
    %982 = vmatpush1.bf16.msra.mxu0 0
    %983 = vmatprep.subr.bf16.mxu0 0
    %984 = vmatpush1.bf16.msra.mxu0 0
    %985 = vmatprep.subr.bf16.mxu0 0
    %986 = vmatpush1.bf16.msra.mxu0 0
    %987 = vmatprep.subr.bf16.mxu0 0
    %988 = vmatpush1.bf16.msra.mxu0 0
    %989 = vmatprep.subr.bf16.mxu0 0
    %990 = vmatpush1.bf16.msra.mxu0 0
    %991 = vmatprep.subr.bf16.mxu0 0
    %992 = vmatpush1.bf16.msra.mxu0 0
    %993 = vmatprep.subr.bf16.mxu0 0
    %994 = vmatpush1.bf16.msra.mxu0 %v718
    %995 = vmatprep.subr.bf16.mxu0 0
    %996 = vmatpush2.bf16.msra.mxu0 0
    %997 = vmatprep.subr.bf16.mxu0 0
    %998 = vmatpush2.bf16.msra.mxu0 0
    %999 = vmatprep.subr.bf16.mxu0 0
    %1000 = vmatpush2.bf16.msra.mxu0 0
    %1001 = vmatprep.subr.bf16.mxu0 0
    %1002 = vmatpush2.bf16.msra.mxu0 0
    %1003 = vmatprep.subr.bf16.mxu0 0
    %1004 = vmatpush2.bf16.msra.mxu0 0
    %1005 = vmatprep.subr.bf16.mxu0 0
    %1006 = vmatpush2.bf16.msra.mxu0 0
    %1007 = vmatprep.subr.bf16.mxu0 0
    %1008 = vmatpush2.bf16.msra.mxu0 0
    %1009 = vmatprep.subr.bf16.mxu0 0
    %1010 = vmatpush2.bf16.msra.mxu0 0
    %1011 = vmatprep.mubr.bf16.mxu0 0
    %1012 = vmatmul.mubr.bf16.gmra.mxu0 %v977
    %v1013 = vpop.f32.mrf.mxu0
    %v1014 = vadd.f32 0.0, %v1013
    %v1015 = vpop.f32.mrf.mxu0
    %v1016 = vpop.f32.mrf.mxu0
    %v1017 = vadd.f32 0.0, %v1016
    %v1018 = vpop.f32.mrf.mxu0
    %1019 = vdwg.mxu0
    %v1020 = vpack.c.bf16 %v1017, %v1014
    %v1037 = vunpack.c.l.b16 %v753
    %v1038 = vunpack.c.l.b16 %v754
    %v1039 = vunpack.c.l.b16 %v755
    %v1040 = vunpack.c.l.b16 %v756
    %v1041 = vunpack.c.l.b16 %v757
    %v1042 = vunpack.c.l.b16 %v758
    %v1043 = vunpack.c.l.b16 %v759
    %v1044 = vunpack.c.l.b16 %v760
    %v1045 = vunpack.c.l.b16 %v761
    %v1046 = vunpack.c.l.b16 %v762
    %v1047 = vunpack.c.l.b16 %v763
    %v1048 = vunpack.c.l.b16 %v764
    %v1049 = vunpack.c.l.b16 %v765
    %v1050 = vunpack.c.l.b16 %v766
    %v1051 = vunpack.c.l.b16 %v767
    %v1052 = vunpack.c.l.b16 %v768
    %v1053 = vpack.c.b16 %v1038, %v1037
    %v1054 = vpack.c.b16 %v1040, %v1039
    %v1055 = vpack.c.b16 %v1042, %v1041
    %v1056 = vpack.c.b16 %v1044, %v1043
    %v1057 = vpack.c.b16 %v1046, %v1045
    %v1058 = vpack.c.b16 %v1048, %v1047
    %v1059 = vpack.c.b16 %v1050, %v1049
    %v1060 = vpack.c.b16 %v1052, %v1051
    %1069 = vmatprep.subr.bf16.mxu0 0
    %1070 = vmatpush1.bf16.msra.mxu0 %v1060
    %1071 = vmatprep.subr.bf16.mxu0 0
    %1072 = vmatpush1.bf16.msra.mxu0 %v1059
    %1073 = vmatprep.subr.bf16.mxu0 0
    %1074 = vmatpush1.bf16.msra.mxu0 %v1058
    %1075 = vmatprep.subr.bf16.mxu0 0
    %1076 = vmatpush1.bf16.msra.mxu0 %v1057
    %1077 = vmatprep.subr.bf16.mxu0 0
    %1078 = vmatpush1.bf16.msra.mxu0 %v1056
    %1079 = vmatprep.subr.bf16.mxu0 0
    %1080 = vmatpush1.bf16.msra.mxu0 %v1055
    %1081 = vmatprep.subr.bf16.mxu0 0
    %1082 = vmatpush1.bf16.msra.mxu0 %v1054
    %1083 = vmatprep.subr.bf16.mxu0 0
    %1084 = vmatpush1.bf16.msra.mxu0 %v1053
    %1085 = vmatprep.subr.bf16.mxu0 0
    %1086 = vmatpush2.bf16.msra.mxu0 0
    %1087 = vmatprep.subr.bf16.mxu0 0
    %1088 = vmatpush2.bf16.msra.mxu0 0
    %1089 = vmatprep.subr.bf16.mxu0 0
    %1090 = vmatpush2.bf16.msra.mxu0 0
    %1091 = vmatprep.subr.bf16.mxu0 0
    %1092 = vmatpush2.bf16.msra.mxu0 0
    %1093 = vmatprep.subr.bf16.mxu0 0
    %1094 = vmatpush2.bf16.msra.mxu0 0
    %1095 = vmatprep.subr.bf16.mxu0 0
    %1096 = vmatpush2.bf16.msra.mxu0 0
    %1097 = vmatprep.subr.bf16.mxu0 0
    %1098 = vmatpush2.bf16.msra.mxu0 0
    %1099 = vmatprep.subr.bf16.mxu0 0
    %1100 = vmatpush2.bf16.msra.mxu0 0
    %1101 = vmatprep.mubr.bf16.mxu0 0
    %1102 = vmatmul.mubr.bf16.gmra.mxu0 %v1020
    %v1103 = vpop.f32.mrf.mxu0
    %v1104 = vadd.f32 0.0, %v1103
    %v1105 = vpop.f32.mrf.mxu0
    %v1106 = vpop.f32.mrf.mxu0
    %v1107 = vadd.f32 0.0, %v1106
    %v1108 = vpop.f32.mrf.mxu0
    %1109 = vdwg.mxu0
    %v1126 = vunpack.c.l.b16 %v737
    %v1127 = vunpack.c.l.b16 %v738
    %v1128 = vunpack.c.l.b16 %v739
    %v1129 = vunpack.c.l.b16 %v740
    %v1130 = vunpack.c.l.b16 %v741
    %v1131 = vunpack.c.l.b16 %v742
    %v1132 = vunpack.c.l.b16 %v743
    %v1133 = vunpack.c.l.b16 %v744
    %v1134 = vunpack.c.l.b16 %v745
    %v1135 = vunpack.c.l.b16 %v746
    %v1136 = vunpack.c.l.b16 %v747
    %v1137 = vunpack.c.l.b16 %v748
    %v1138 = vunpack.c.l.b16 %v749
    %v1139 = vunpack.c.l.b16 %v750
    %v1140 = vunpack.c.l.b16 %v751
    %v1141 = vunpack.c.l.b16 %v752
    %v1142 = vpack.c.b16 %v1127, %v1126
    %v1143 = vpack.c.b16 %v1129, %v1128
    %v1144 = vpack.c.b16 %v1131, %v1130
    %v1145 = vpack.c.b16 %v1133, %v1132
    %v1146 = vpack.c.b16 %v1135, %v1134
    %v1147 = vpack.c.b16 %v1137, %v1136
    %v1148 = vpack.c.b16 %v1139, %v1138
    %v1149 = vpack.c.b16 %v1141, %v1140
    %1158 = vmatprep.subr.bf16.mxu0 0
    %1159 = vmatpush1.bf16.msra.mxu0 %v1149
    %1160 = vmatprep.subr.bf16.mxu0 0
    %1161 = vmatpush1.bf16.msra.mxu0 %v1148
    %1162 = vmatprep.subr.bf16.mxu0 0
    %1163 = vmatpush1.bf16.msra.mxu0 %v1147
    %1164 = vmatprep.subr.bf16.mxu0 0
    %1165 = vmatpush1.bf16.msra.mxu0 %v1146
    %1166 = vmatprep.subr.bf16.mxu0 0
    %1167 = vmatpush1.bf16.msra.mxu0 %v1145
    %1168 = vmatprep.subr.bf16.mxu0 0
    %1169 = vmatpush1.bf16.msra.mxu0 %v1144
    %1170 = vmatprep.subr.bf16.mxu0 0
    %1171 = vmatpush1.bf16.msra.mxu0 %v1143
    %1172 = vmatprep.subr.bf16.mxu0 0
    %1173 = vmatpush1.bf16.msra.mxu0 %v1142
    %1174 = vmatprep.subr.bf16.mxu0 0
    %1175 = vmatpush2.bf16.msra.mxu0 0
    %1176 = vmatprep.subr.bf16.mxu0 0
    %1177 = vmatpush2.bf16.msra.mxu0 0
    %1178 = vmatprep.subr.bf16.mxu0 0
    %1179 = vmatpush2.bf16.msra.mxu0 0
    %1180 = vmatprep.subr.bf16.mxu0 0
    %1181 = vmatpush2.bf16.msra.mxu0 0
    %1182 = vmatprep.subr.bf16.mxu0 0
    %1183 = vmatpush2.bf16.msra.mxu0 0
    %1184 = vmatprep.subr.bf16.mxu0 0
    %1185 = vmatpush2.bf16.msra.mxu0 0
    %1186 = vmatprep.subr.bf16.mxu0 0
    %1187 = vmatpush2.bf16.msra.mxu0 0
    %1188 = vmatprep.subr.bf16.mxu0 0
    %1189 = vmatpush2.bf16.msra.mxu0 0
    %1190 = vmatprep.mubr.bf16.mxu0 0
    %1191 = vmatmul.mubr.bf16.gmra.mxu0 %v911
    %v1192 = vpop.f32.mrf.mxu0
    %v1193 = vadd.f32 %v1104, %v1192
    %v1194 = vpop.f32.mrf.mxu0
    %v1195 = vpop.f32.mrf.mxu0
    %v1196 = vadd.f32 %v1107, %v1195
    %v1197 = vpop.f32.mrf.mxu0
    %1198 = vdwg.mxu0
    %1199 = vmatprep.subr.bf16.mxu0 0
    %1200 = vmatpush1.bf16.xpose.msra.mxu0 0
    %1201 = vmatprep.subr.bf16.mxu0 0
    %1202 = vmatpush1.bf16.xpose.msra.mxu0 0
    %1203 = vmatprep.subr.bf16.mxu0 0
    %1204 = vmatpush1.bf16.xpose.msra.mxu0 0
    %1205 = vmatprep.subr.bf16.mxu0 0
    %1206 = vmatpush1.bf16.xpose.msra.mxu0 0
    %1207 = vmatprep.subr.bf16.mxu0 0
    %1208 = vmatpush1.bf16.xpose.msra.mxu0 0
    %1209 = vmatprep.subr.bf16.mxu0 0
    %1210 = vmatpush1.bf16.xpose.msra.mxu0 0
    %1211 = vmatprep.subr.bf16.mxu0 0
    %1212 = vmatpush1.bf16.xpose.msra.mxu0 0
    %1213 = vmatprep.subr.bf16.mxu0 0
    %1214 = vmatpush1.bf16.xpose.msra.mxu0 %v720
    %1215 = vmatprep.subr.bf16.mxu0 0
    %1216 = vmatpush2.bf16.xpose.msra.mxu0 0
    %1217 = vmatprep.subr.bf16.mxu0 0
    %1218 = vmatpush2.bf16.xpose.msra.mxu0 0
    %1219 = vmatprep.subr.bf16.mxu0 0
    %1220 = vmatpush2.bf16.xpose.msra.mxu0 0
    %1221 = vmatprep.subr.bf16.mxu0 0
    %1222 = vmatpush2.bf16.xpose.msra.mxu0 0
    %1223 = vmatprep.subr.bf16.mxu0 0
    %1224 = vmatpush2.bf16.xpose.msra.mxu0 0
    %1225 = vmatprep.subr.bf16.mxu0 0
    %1226 = vmatpush2.bf16.xpose.msra.mxu0 0
    %1227 = vmatprep.subr.bf16.mxu0 0
    %1228 = vmatpush2.bf16.xpose.msra.mxu0 0
    %1229 = vmatprep.subr.bf16.mxu0 0
    %1230 = vmatpush2.bf16.xpose.msra.mxu0 0
    %1231 = vmatprep.mubr.bf16.mxu0 0
    %1232 = vmatmul.mubr.bf16.gmra.mxu0 %v719
    %v1233 = vpop.f32.mrf.mxu0
    %v1234 = vadd.f32 0.0, %v1233
    %v1235 = vpop.f32.mrf.mxu0
    %v1236 = vpop.f32.mrf.mxu0
    %v1237 = vadd.f32 0.0, %v1236
    %v1238 = vpop.f32.mrf.mxu0
    %1239 = vdwg.mxu0
    %v1240 = vsel %vm843, %v1234, -inf
    %1241 = vmax.xlane.f32.xlu0 %v1240
    %v1242 = vpop.xlane.xlu0 %1241
    %v1243 = vsel %vm843, %v1237, -inf
    %1244 = vmax.xlane.f32.xlu0 %v1243
    %v1245 = vpop.xlane.xlu0 %1244
    %v1246 = vsub.f32 %v1234, %v1242
    %v1247 = vsub.f32 %v1237, %v1245
    %v1248 = vmul.f32 %v1246, 1.442695
    %v1249 = vpow.pop %v1248
    %v1250 = vmul.f32 %v1247, 1.442695
    %v1251 = vpow.pop %v1250
    %v1252 = vsel %vm843, %v1249, 0.0
    %1253 = vadd.xlane.f32.xlu0 %v1252
    %v1254 = vpop.xlane.xlu0 %1253
    %v1255 = vsel %vm843, %v1251, 0.0
    %1256 = vadd.xlane.f32.xlu0 %v1255
    %v1257 = vpop.xlane.xlu0 %1256
    %v1258 = vrcp.pop %v1254
    %v1259 = vmul.f32 %v1249, %v1258
    %v1260 = vrcp.pop %v1257
    %v1261 = vmul.f32 %v1251, %v1260
    %v1262 = vpack.c.bf16 %v1261, %v1259
    %v1264 = vsel %vm843, %v1262, 0
    %1266 = vmatprep.subr.bf16.mxu0 0
    %1267 = vmatpush1.bf16.msra.mxu0 0
    %1268 = vmatprep.subr.bf16.mxu0 0
    %1269 = vmatpush1.bf16.msra.mxu0 0
    %1270 = vmatprep.subr.bf16.mxu0 0
    %1271 = vmatpush1.bf16.msra.mxu0 0
    %1272 = vmatprep.subr.bf16.mxu0 0
    %1273 = vmatpush1.bf16.msra.mxu0 0
    %1274 = vmatprep.subr.bf16.mxu0 0
    %1275 = vmatpush1.bf16.msra.mxu0 0
    %1276 = vmatprep.subr.bf16.mxu0 0
    %1277 = vmatpush1.bf16.msra.mxu0 0
    %1278 = vmatprep.subr.bf16.mxu0 0
    %1279 = vmatpush1.bf16.msra.mxu0 0
    %1280 = vmatprep.subr.bf16.mxu0 0
    %1281 = vmatpush1.bf16.msra.mxu0 %v721
    %1282 = vmatprep.subr.bf16.mxu0 0
    %1283 = vmatpush2.bf16.msra.mxu0 0
    %1284 = vmatprep.subr.bf16.mxu0 0
    %1285 = vmatpush2.bf16.msra.mxu0 0
    %1286 = vmatprep.subr.bf16.mxu0 0
    %1287 = vmatpush2.bf16.msra.mxu0 0
    %1288 = vmatprep.subr.bf16.mxu0 0
    %1289 = vmatpush2.bf16.msra.mxu0 0
    %1290 = vmatprep.subr.bf16.mxu0 0
    %1291 = vmatpush2.bf16.msra.mxu0 0
    %1292 = vmatprep.subr.bf16.mxu0 0
    %1293 = vmatpush2.bf16.msra.mxu0 0
    %1294 = vmatprep.subr.bf16.mxu0 0
    %1295 = vmatpush2.bf16.msra.mxu0 0
    %1296 = vmatprep.subr.bf16.mxu0 0
    %1297 = vmatpush2.bf16.msra.mxu0 0
    %1298 = vmatprep.mubr.bf16.mxu0 0
    %1299 = vmatmul.mubr.bf16.gmra.mxu0 %v1264
    %v1300 = vpop.f32.mrf.mxu0
    %v1301 = vadd.f32 0.0, %v1300
    %v1302 = vpop.f32.mrf.mxu0
    %v1303 = vpop.f32.mrf.mxu0
    %v1304 = vadd.f32 0.0, %v1303
    %v1305 = vpop.f32.mrf.mxu0
    %1306 = vdwg.mxu0
    %v1307 = vpack.c.bf16 %v1304, %v1301
    %v1324 = vunpack.c.l.b16 %v769
    %v1325 = vunpack.c.l.b16 %v770
    %v1326 = vunpack.c.l.b16 %v771
    %v1327 = vunpack.c.l.b16 %v772
    %v1328 = vunpack.c.l.b16 %v773
    %v1329 = vunpack.c.l.b16 %v774
    %v1330 = vunpack.c.l.b16 %v775
    %v1331 = vunpack.c.l.b16 %v776
    %v1332 = vunpack.c.l.b16 %v777
    %v1333 = vunpack.c.l.b16 %v778
    %v1334 = vunpack.c.l.b16 %v779
    %v1335 = vunpack.c.l.b16 %v780
    %v1336 = vunpack.c.l.b16 %v781
    %v1337 = vunpack.c.l.b16 %v782
    %v1338 = vunpack.c.l.b16 %v783
    %v1339 = vunpack.c.l.b16 %v784
    %v1340 = vpack.c.b16 %v1325, %v1324
    %v1341 = vpack.c.b16 %v1327, %v1326
    %v1342 = vpack.c.b16 %v1329, %v1328
    %v1343 = vpack.c.b16 %v1331, %v1330
    %v1344 = vpack.c.b16 %v1333, %v1332
    %v1345 = vpack.c.b16 %v1335, %v1334
    %v1346 = vpack.c.b16 %v1337, %v1336
    %v1347 = vpack.c.b16 %v1339, %v1338
    %1356 = vmatprep.subr.bf16.mxu0 0
    %1357 = vmatpush1.bf16.msra.mxu0 %v1347
    %1358 = vmatprep.subr.bf16.mxu0 0
    %1359 = vmatpush1.bf16.msra.mxu0 %v1346
    %1360 = vmatprep.subr.bf16.mxu0 0
    %1361 = vmatpush1.bf16.msra.mxu0 %v1345
    %1362 = vmatprep.subr.bf16.mxu0 0
    %1363 = vmatpush1.bf16.msra.mxu0 %v1344
    %1364 = vmatprep.subr.bf16.mxu0 0
    %1365 = vmatpush1.bf16.msra.mxu0 %v1343
    %1366 = vmatprep.subr.bf16.mxu0 0
    %1367 = vmatpush1.bf16.msra.mxu0 %v1342
    %1368 = vmatprep.subr.bf16.mxu0 0
    %1369 = vmatpush1.bf16.msra.mxu0 %v1341
    %1370 = vmatprep.subr.bf16.mxu0 0
    %1371 = vmatpush1.bf16.msra.mxu0 %v1340
    %1372 = vmatprep.subr.bf16.mxu0 0
    %1373 = vmatpush2.bf16.msra.mxu0 0
    %1374 = vmatprep.subr.bf16.mxu0 0
    %1375 = vmatpush2.bf16.msra.mxu0 0
    %1376 = vmatprep.subr.bf16.mxu0 0
    %1377 = vmatpush2.bf16.msra.mxu0 0
    %1378 = vmatprep.subr.bf16.mxu0 0
    %1379 = vmatpush2.bf16.msra.mxu0 0
    %1380 = vmatprep.subr.bf16.mxu0 0
    %1381 = vmatpush2.bf16.msra.mxu0 0
    %1382 = vmatprep.subr.bf16.mxu0 0
    %1383 = vmatpush2.bf16.msra.mxu0 0
    %1384 = vmatprep.subr.bf16.mxu0 0
    %1385 = vmatpush2.bf16.msra.mxu0 0
    %1386 = vmatprep.subr.bf16.mxu0 0
    %1387 = vmatpush2.bf16.msra.mxu0 0
    %1388 = vmatprep.mubr.bf16.mxu0 0
    %1389 = vmatmul.mubr.bf16.gmra.mxu0 %v1307
    %v1390 = vpop.f32.mrf.mxu0
    %v1391 = vadd.f32 0.0, %v1390
    %v1392 = vpop.f32.mrf.mxu0
    %v1393 = vpop.f32.mrf.mxu0
    %v1394 = vadd.f32 0.0, %v1393
    %v1395 = vpop.f32.mrf.mxu0
    %1396 = vdwg.mxu0
    %v1397 = vadd.f32 %v1193, %v1391
    %v1398 = vadd.f32 %v1196, %v1394
    %1399 = vmatprep.subr.bf16.mxu0 0
    %1400 = vmatpush1.bf16.xpose.msra.mxu0 0
    %1401 = vmatprep.subr.bf16.mxu0 0
    %1402 = vmatpush1.bf16.xpose.msra.mxu0 0
    %1403 = vmatprep.subr.bf16.mxu0 0
    %1404 = vmatpush1.bf16.xpose.msra.mxu0 0
    %1405 = vmatprep.subr.bf16.mxu0 0
    %1406 = vmatpush1.bf16.xpose.msra.mxu0 0
    %1407 = vmatprep.subr.bf16.mxu0 0
    %1408 = vmatpush1.bf16.xpose.msra.mxu0 0
    %1409 = vmatprep.subr.bf16.mxu0 0
    %1410 = vmatpush1.bf16.xpose.msra.mxu0 0
    %1411 = vmatprep.subr.bf16.mxu0 0
    %1412 = vmatpush1.bf16.xpose.msra.mxu0 0
    %1413 = vmatprep.subr.bf16.mxu0 0
    %1414 = vmatpush1.bf16.xpose.msra.mxu0 %v723
    %1415 = vmatprep.subr.bf16.mxu0 0
    %1416 = vmatpush2.bf16.xpose.msra.mxu0 0
    %1417 = vmatprep.subr.bf16.mxu0 0
    %1418 = vmatpush2.bf16.xpose.msra.mxu0 0
    %1419 = vmatprep.subr.bf16.mxu0 0
    %1420 = vmatpush2.bf16.xpose.msra.mxu0 0
    %1421 = vmatprep.subr.bf16.mxu0 0
    %1422 = vmatpush2.bf16.xpose.msra.mxu0 0
    %1423 = vmatprep.subr.bf16.mxu0 0
    %1424 = vmatpush2.bf16.xpose.msra.mxu0 0
    %1425 = vmatprep.subr.bf16.mxu0 0
    %1426 = vmatpush2.bf16.xpose.msra.mxu0 0
    %1427 = vmatprep.subr.bf16.mxu0 0
    %1428 = vmatpush2.bf16.xpose.msra.mxu0 0
    %1429 = vmatprep.subr.bf16.mxu0 0
    %1430 = vmatpush2.bf16.xpose.msra.mxu0 0
    %1431 = vmatprep.mubr.bf16.mxu0 0
    %1432 = vmatmul.mubr.bf16.gmra.mxu0 %v722
    %v1433 = vpop.f32.mrf.mxu0
    %v1434 = vadd.f32 0.0, %v1433
    %v1435 = vpop.f32.mrf.mxu0
    %v1436 = vpop.f32.mrf.mxu0
    %v1437 = vadd.f32 0.0, %v1436
    %v1438 = vpop.f32.mrf.mxu0
    %1439 = vdwg.mxu0
    %v1440 = vsel %vm843, %v1434, -inf
    %1441 = vmax.xlane.f32.xlu0 %v1440
    %v1442 = vpop.xlane.xlu0 %1441
    %v1443 = vsel %vm843, %v1437, -inf
    %1444 = vmax.xlane.f32.xlu0 %v1443
    %v1445 = vpop.xlane.xlu0 %1444
    %v1446 = vsub.f32 %v1434, %v1442
    %v1447 = vsub.f32 %v1437, %v1445
    %v1448 = vmul.f32 %v1446, 1.442695
    %v1449 = vpow.pop %v1448
    %v1450 = vmul.f32 %v1447, 1.442695
    %v1451 = vpow.pop %v1450
    %v1452 = vsel %vm843, %v1449, 0.0
    %1453 = vadd.xlane.f32.xlu0 %v1452
    %v1454 = vpop.xlane.xlu0 %1453
    %v1455 = vsel %vm843, %v1451, 0.0
    %1456 = vadd.xlane.f32.xlu0 %v1455
    %v1457 = vpop.xlane.xlu0 %1456
    %v1458 = vrcp.pop %v1454
    %v1459 = vmul.f32 %v1449, %v1458
    %v1460 = vrcp.pop %v1457
    %v1461 = vmul.f32 %v1451, %v1460
    %v1462 = vpack.c.bf16 %v1461, %v1459
    %v1464 = vsel %vm843, %v1462, 0
    %1466 = vmatprep.subr.bf16.mxu0 0
    %1467 = vmatpush1.bf16.msra.mxu0 0
    %1468 = vmatprep.subr.bf16.mxu0 0
    %1469 = vmatpush1.bf16.msra.mxu0 0
    %1470 = vmatprep.subr.bf16.mxu0 0
    %1471 = vmatpush1.bf16.msra.mxu0 0
    %1472 = vmatprep.subr.bf16.mxu0 0
    %1473 = vmatpush1.bf16.msra.mxu0 0
    %1474 = vmatprep.subr.bf16.mxu0 0
    %1475 = vmatpush1.bf16.msra.mxu0 0
    %1476 = vmatprep.subr.bf16.mxu0 0
    %1477 = vmatpush1.bf16.msra.mxu0 0
    %1478 = vmatprep.subr.bf16.mxu0 0
    %1479 = vmatpush1.bf16.msra.mxu0 0
    %1480 = vmatprep.subr.bf16.mxu0 0
    %1481 = vmatpush1.bf16.msra.mxu0 %v724
    %1482 = vmatprep.subr.bf16.mxu0 0
    %1483 = vmatpush2.bf16.msra.mxu0 0
    %1484 = vmatprep.subr.bf16.mxu0 0
    %1485 = vmatpush2.bf16.msra.mxu0 0
    %1486 = vmatprep.subr.bf16.mxu0 0
    %1487 = vmatpush2.bf16.msra.mxu0 0
    %1488 = vmatprep.subr.bf16.mxu0 0
    %1489 = vmatpush2.bf16.msra.mxu0 0
    %1490 = vmatprep.subr.bf16.mxu0 0
    %1491 = vmatpush2.bf16.msra.mxu0 0
    %1492 = vmatprep.subr.bf16.mxu0 0
    %1493 = vmatpush2.bf16.msra.mxu0 0
    %1494 = vmatprep.subr.bf16.mxu0 0
    %1495 = vmatpush2.bf16.msra.mxu0 0
    %1496 = vmatprep.subr.bf16.mxu0 0
    %1497 = vmatpush2.bf16.msra.mxu0 0
    %1498 = vmatprep.mubr.bf16.mxu0 0
    %1499 = vmatmul.mubr.bf16.gmra.mxu0 %v1464
    %v1500 = vpop.f32.mrf.mxu0
    %v1501 = vadd.f32 0.0, %v1500
    %v1502 = vpop.f32.mrf.mxu0
    %v1503 = vpop.f32.mrf.mxu0
    %v1504 = vadd.f32 0.0, %v1503
    %v1505 = vpop.f32.mrf.mxu0
    %1506 = vdwg.mxu0
    %v1507 = vpack.c.bf16 %v1504, %v1501
    %v1524 = vunpack.c.l.b16 %v785
    %v1525 = vunpack.c.l.b16 %v786
    %v1526 = vunpack.c.l.b16 %v787
    %v1527 = vunpack.c.l.b16 %v788
    %v1528 = vunpack.c.l.b16 %v789
    %v1529 = vunpack.c.l.b16 %v790
    %v1530 = vunpack.c.l.b16 %v791
    %v1531 = vunpack.c.l.b16 %v792
    %v1532 = vunpack.c.l.b16 %v793
    %v1533 = vunpack.c.l.b16 %v794
    %v1534 = vunpack.c.l.b16 %v795
    %v1535 = vunpack.c.l.b16 %v796
    %v1536 = vunpack.c.l.b16 %v797
    %v1537 = vunpack.c.l.b16 %v798
    %v1538 = vunpack.c.l.b16 %v799
    %v1539 = vunpack.c.l.b16 %v800
    %v1540 = vpack.c.b16 %v1525, %v1524
    %v1541 = vpack.c.b16 %v1527, %v1526
    %v1542 = vpack.c.b16 %v1529, %v1528
    %v1543 = vpack.c.b16 %v1531, %v1530
    %v1544 = vpack.c.b16 %v1533, %v1532
    %v1545 = vpack.c.b16 %v1535, %v1534
    %v1546 = vpack.c.b16 %v1537, %v1536
    %v1547 = vpack.c.b16 %v1539, %v1538
    %1556 = vmatprep.subr.bf16.mxu0 0
    %1557 = vmatpush1.bf16.msra.mxu0 %v1547
    %1558 = vmatprep.subr.bf16.mxu0 0
    %1559 = vmatpush1.bf16.msra.mxu0 %v1546
    %1560 = vmatprep.subr.bf16.mxu0 0
    %1561 = vmatpush1.bf16.msra.mxu0 %v1545
    %1562 = vmatprep.subr.bf16.mxu0 0
    %1563 = vmatpush1.bf16.msra.mxu0 %v1544
    %1564 = vmatprep.subr.bf16.mxu0 0
    %1565 = vmatpush1.bf16.msra.mxu0 %v1543
    %1566 = vmatprep.subr.bf16.mxu0 0
    %1567 = vmatpush1.bf16.msra.mxu0 %v1542
    %1568 = vmatprep.subr.bf16.mxu0 0
    %1569 = vmatpush1.bf16.msra.mxu0 %v1541
    %1570 = vmatprep.subr.bf16.mxu0 0
    %1571 = vmatpush1.bf16.msra.mxu0 %v1540
    %1572 = vmatprep.subr.bf16.mxu0 0
    %1573 = vmatpush2.bf16.msra.mxu0 0
    %1574 = vmatprep.subr.bf16.mxu0 0
    %1575 = vmatpush2.bf16.msra.mxu0 0
    %1576 = vmatprep.subr.bf16.mxu0 0
    %1577 = vmatpush2.bf16.msra.mxu0 0
    %1578 = vmatprep.subr.bf16.mxu0 0
    %1579 = vmatpush2.bf16.msra.mxu0 0
    %1580 = vmatprep.subr.bf16.mxu0 0
    %1581 = vmatpush2.bf16.msra.mxu0 0
    %1582 = vmatprep.subr.bf16.mxu0 0
    %1583 = vmatpush2.bf16.msra.mxu0 0
    %1584 = vmatprep.subr.bf16.mxu0 0
    %1585 = vmatpush2.bf16.msra.mxu0 0
    %1586 = vmatprep.subr.bf16.mxu0 0
    %1587 = vmatpush2.bf16.msra.mxu0 0
    %1588 = vmatprep.mubr.bf16.mxu0 0
    %1589 = vmatmul.mubr.bf16.gmra.mxu0 %v1507
    %v1590 = vpop.f32.mrf.mxu0
    %v1591 = vadd.f32 0.0, %v1590
    %v1592 = vpop.f32.mrf.mxu0
    %v1593 = vpop.f32.mrf.mxu0
    %v1594 = vadd.f32 0.0, %v1593
    %v1595 = vpop.f32.mrf.mxu0
    %1596 = vdwg.mxu0
    %v1597 = vadd.f32 %v1397, %v1591
    %v1598 = vadd.f32 %v1398, %v1594
    %v1600 = vlaneseq
    %v1601 = vshrl.u32 %v1600, 7
    %v1602 = vsub.s32 0, %v1601
    %v1603 = vrot.slane %v801, %v1602
    %v1605 = vadd.f32 %v1597, %v1603
    %v1606 = vadd.f32 %v1598, %v1603
    %1607 = vmatprep.subr.bf16.mxu0 0
    %1608 = vmatpush1.bf16.xpose.msra.mxu0 0
    %1609 = vmatprep.subr.bf16.mxu0 0
    %1610 = vmatpush1.bf16.xpose.msra.mxu0 0
    %1611 = vmatprep.subr.bf16.mxu0 0
    %1612 = vmatpush1.bf16.xpose.msra.mxu0 0
    %1613 = vmatprep.subr.bf16.mxu0 0
    %1614 = vmatpush1.bf16.xpose.msra.mxu0 0
    %1615 = vmatprep.subr.bf16.mxu0 0
    %1616 = vmatpush1.bf16.xpose.msra.mxu0 0
    %1617 = vmatprep.subr.bf16.mxu0 0
    %1618 = vmatpush1.bf16.xpose.msra.mxu0 0
    %1619 = vmatprep.subr.bf16.mxu0 0
    %1620 = vmatpush1.bf16.xpose.msra.mxu0 0
    %1621 = vmatprep.subr.bf16.mxu0 0
    %1622 = vmatpush1.bf16.xpose.msra.mxu0 %v726
    %1623 = vmatprep.subr.bf16.mxu0 0
    %1624 = vmatpush2.bf16.xpose.msra.mxu0 0
    %1625 = vmatprep.subr.bf16.mxu0 0
    %1626 = vmatpush2.bf16.xpose.msra.mxu0 0
    %1627 = vmatprep.subr.bf16.mxu0 0
    %1628 = vmatpush2.bf16.xpose.msra.mxu0 0
    %1629 = vmatprep.subr.bf16.mxu0 0
    %1630 = vmatpush2.bf16.xpose.msra.mxu0 0
    %1631 = vmatprep.subr.bf16.mxu0 0
    %1632 = vmatpush2.bf16.xpose.msra.mxu0 0
    %1633 = vmatprep.subr.bf16.mxu0 0
    %1634 = vmatpush2.bf16.xpose.msra.mxu0 0
    %1635 = vmatprep.subr.bf16.mxu0 0
    %1636 = vmatpush2.bf16.xpose.msra.mxu0 0
    %1637 = vmatprep.subr.bf16.mxu0 0
    %1638 = vmatpush2.bf16.xpose.msra.mxu0 0
    %1639 = vmatprep.mubr.bf16.mxu0 0
    %1640 = vmatmul.mubr.bf16.gmra.mxu0 %v725
    %v1641 = vpop.f32.mrf.mxu0
    %v1642 = vadd.f32 0.0, %v1641
    %v1643 = vpop.f32.mrf.mxu0
    %v1644 = vpop.f32.mrf.mxu0
    %v1645 = vadd.f32 0.0, %v1644
    %v1646 = vpop.f32.mrf.mxu0
    %1647 = vdwg.mxu0
    %v1648 = vsel %vm843, %v1642, -inf
    %1649 = vmax.xlane.f32.xlu0 %v1648
    %v1650 = vpop.xlane.xlu0 %1649
    %v1651 = vsel %vm843, %v1645, -inf
    %1652 = vmax.xlane.f32.xlu0 %v1651
    %v1653 = vpop.xlane.xlu0 %1652
    %v1654 = vsub.f32 %v1642, %v1650
    %v1655 = vsub.f32 %v1645, %v1653
    %v1656 = vmul.f32 %v1654, 1.442695
    %v1657 = vpow.pop %v1656
    %v1658 = vmul.f32 %v1655, 1.442695
    %v1659 = vpow.pop %v1658
    %v1660 = vsel %vm843, %v1657, 0.0
    %1661 = vadd.xlane.f32.xlu0 %v1660
    %v1662 = vpop.xlane.xlu0 %1661
    %v1663 = vsel %vm843, %v1659, 0.0
    %1664 = vadd.xlane.f32.xlu0 %v1663
    %v1665 = vpop.xlane.xlu0 %1664
    %v1666 = vrcp.pop %v1662
    %v1667 = vmul.f32 %v1657, %v1666
    %v1668 = vrcp.pop %v1665
    %v1669 = vmul.f32 %v1659, %v1668
    %v1670 = vpack.c.bf16 %v1669, %v1667
    %v1672 = vsel %vm843, %v1670, 0
    %1674 = vmatprep.subr.bf16.mxu0 0
    %1675 = vmatpush1.bf16.msra.mxu0 0
    %1676 = vmatprep.subr.bf16.mxu0 0
    %1677 = vmatpush1.bf16.msra.mxu0 0
    %1678 = vmatprep.subr.bf16.mxu0 0
    %1679 = vmatpush1.bf16.msra.mxu0 0
    %1680 = vmatprep.subr.bf16.mxu0 0
    %1681 = vmatpush1.bf16.msra.mxu0 0
    %1682 = vmatprep.subr.bf16.mxu0 0
    %1683 = vmatpush1.bf16.msra.mxu0 0
    %1684 = vmatprep.subr.bf16.mxu0 0
    %1685 = vmatpush1.bf16.msra.mxu0 0
    %1686 = vmatprep.subr.bf16.mxu0 0
    %1687 = vmatpush1.bf16.msra.mxu0 0
    %1688 = vmatprep.subr.bf16.mxu0 0
    %1689 = vmatpush1.bf16.msra.mxu0 %v727
    %1690 = vmatprep.subr.bf16.mxu0 0
    %1691 = vmatpush2.bf16.msra.mxu0 0
    %1692 = vmatprep.subr.bf16.mxu0 0
    %1693 = vmatpush2.bf16.msra.mxu0 0
    %1694 = vmatprep.subr.bf16.mxu0 0
    %1695 = vmatpush2.bf16.msra.mxu0 0
    %1696 = vmatprep.subr.bf16.mxu0 0
    %1697 = vmatpush2.bf16.msra.mxu0 0
    %1698 = vmatprep.subr.bf16.mxu0 0
    %1699 = vmatpush2.bf16.msra.mxu0 0
    %1700 = vmatprep.subr.bf16.mxu0 0
    %1701 = vmatpush2.bf16.msra.mxu0 0
    %1702 = vmatprep.subr.bf16.mxu0 0
    %1703 = vmatpush2.bf16.msra.mxu0 0
    %1704 = vmatprep.subr.bf16.mxu0 0
    %1705 = vmatpush2.bf16.msra.mxu0 0
    %1706 = vmatprep.mubr.bf16.mxu0 0
    %1707 = vmatmul.mubr.bf16.gmra.mxu0 %v1672
    %v1708 = vpop.f32.mrf.mxu0
    %v1709 = vadd.f32 0.0, %v1708
    %v1710 = vpop.f32.mrf.mxu0
    %v1711 = vpop.f32.mrf.mxu0
    %v1712 = vadd.f32 0.0, %v1711
    %v1713 = vpop.f32.mrf.mxu0
    %1714 = vdwg.mxu0
    %v1715 = vpack.c.bf16 %v1712, %v1709
    %1716 = vmatprep.subr.bf16.mxu0 0
    %1717 = vmatpush1.bf16.xpose.msra.mxu0 0
    %1718 = vmatprep.subr.bf16.mxu0 0
    %1719 = vmatpush1.bf16.xpose.msra.mxu0 0
    %1720 = vmatprep.subr.bf16.mxu0 0
    %1721 = vmatpush1.bf16.xpose.msra.mxu0 0
    %1722 = vmatprep.subr.bf16.mxu0 0
    %1723 = vmatpush1.bf16.xpose.msra.mxu0 0
    %1724 = vmatprep.subr.bf16.mxu0 0
    %1725 = vmatpush1.bf16.xpose.msra.mxu0 0
    %1726 = vmatprep.subr.bf16.mxu0 0
    %1727 = vmatpush1.bf16.xpose.msra.mxu0 0
    %1728 = vmatprep.subr.bf16.mxu0 0
    %1729 = vmatpush1.bf16.xpose.msra.mxu0 0
    %1730 = vmatprep.subr.bf16.mxu0 0
    %1731 = vmatpush1.bf16.xpose.msra.mxu0 %v729
    %1732 = vmatprep.subr.bf16.mxu0 0
    %1733 = vmatpush2.bf16.xpose.msra.mxu0 0
    %1734 = vmatprep.subr.bf16.mxu0 0
    %1735 = vmatpush2.bf16.xpose.msra.mxu0 0
    %1736 = vmatprep.subr.bf16.mxu0 0
    %1737 = vmatpush2.bf16.xpose.msra.mxu0 0
    %1738 = vmatprep.subr.bf16.mxu0 0
    %1739 = vmatpush2.bf16.xpose.msra.mxu0 0
    %1740 = vmatprep.subr.bf16.mxu0 0
    %1741 = vmatpush2.bf16.xpose.msra.mxu0 0
    %1742 = vmatprep.subr.bf16.mxu0 0
    %1743 = vmatpush2.bf16.xpose.msra.mxu0 0
    %1744 = vmatprep.subr.bf16.mxu0 0
    %1745 = vmatpush2.bf16.xpose.msra.mxu0 0
    %1746 = vmatprep.subr.bf16.mxu0 0
    %1747 = vmatpush2.bf16.xpose.msra.mxu0 0
    %1748 = vmatprep.mubr.bf16.mxu0 0
    %1749 = vmatmul.mubr.bf16.gmra.mxu0 %v728
    %v1750 = vpop.f32.mrf.mxu0
    %v1751 = vadd.f32 0.0, %v1750
    %v1752 = vpop.f32.mrf.mxu0
    %v1753 = vpop.f32.mrf.mxu0
    %v1754 = vadd.f32 0.0, %v1753
    %v1755 = vpop.f32.mrf.mxu0
    %1756 = vdwg.mxu0
    %v1757 = vsel %vm843, %v1751, -inf
    %1758 = vmax.xlane.f32.xlu0 %v1757
    %v1759 = vpop.xlane.xlu0 %1758
    %v1760 = vsel %vm843, %v1754, -inf
    %1761 = vmax.xlane.f32.xlu0 %v1760
    %v1762 = vpop.xlane.xlu0 %1761
    %v1763 = vsub.f32 %v1751, %v1759
    %v1764 = vsub.f32 %v1754, %v1762
    %v1765 = vmul.f32 %v1763, 1.442695
    %v1766 = vpow.pop %v1765
    %v1767 = vmul.f32 %v1764, 1.442695
    %v1768 = vpow.pop %v1767
    %v1769 = vsel %vm843, %v1766, 0.0
    %1770 = vadd.xlane.f32.xlu0 %v1769
    %v1771 = vpop.xlane.xlu0 %1770
    %v1772 = vsel %vm843, %v1768, 0.0
    %1773 = vadd.xlane.f32.xlu0 %v1772
    %v1774 = vpop.xlane.xlu0 %1773
    %v1775 = vrcp.pop %v1771
    %v1776 = vmul.f32 %v1766, %v1775
    %v1777 = vrcp.pop %v1774
    %v1778 = vmul.f32 %v1768, %v1777
    %v1779 = vpack.c.bf16 %v1778, %v1776
    %v1781 = vsel %vm843, %v1779, 0
    %1783 = vmatprep.subr.bf16.mxu0 0
    %1784 = vmatpush1.bf16.msra.mxu0 0
    %1785 = vmatprep.subr.bf16.mxu0 0
    %1786 = vmatpush1.bf16.msra.mxu0 0
    %1787 = vmatprep.subr.bf16.mxu0 0
    %1788 = vmatpush1.bf16.msra.mxu0 0
    %1789 = vmatprep.subr.bf16.mxu0 0
    %1790 = vmatpush1.bf16.msra.mxu0 0
    %1791 = vmatprep.subr.bf16.mxu0 0
    %1792 = vmatpush1.bf16.msra.mxu0 0
    %1793 = vmatprep.subr.bf16.mxu0 0
    %1794 = vmatpush1.bf16.msra.mxu0 0
    %1795 = vmatprep.subr.bf16.mxu0 0
    %1796 = vmatpush1.bf16.msra.mxu0 0
    %1797 = vmatprep.subr.bf16.mxu0 0
    %1798 = vmatpush1.bf16.msra.mxu0 %v730
    %1799 = vmatprep.subr.bf16.mxu0 0
    %1800 = vmatpush2.bf16.msra.mxu0 0
    %1801 = vmatprep.subr.bf16.mxu0 0
    %1802 = vmatpush2.bf16.msra.mxu0 0
    %1803 = vmatprep.subr.bf16.mxu0 0
    %1804 = vmatpush2.bf16.msra.mxu0 0
    %1805 = vmatprep.subr.bf16.mxu0 0
    %1806 = vmatpush2.bf16.msra.mxu0 0
    %1807 = vmatprep.subr.bf16.mxu0 0
    %1808 = vmatpush2.bf16.msra.mxu0 0
    %1809 = vmatprep.subr.bf16.mxu0 0
    %1810 = vmatpush2.bf16.msra.mxu0 0
    %1811 = vmatprep.subr.bf16.mxu0 0
    %1812 = vmatpush2.bf16.msra.mxu0 0
    %1813 = vmatprep.subr.bf16.mxu0 0
    %1814 = vmatpush2.bf16.msra.mxu0 0
    %1815 = vmatprep.mubr.bf16.mxu0 0
    %1816 = vmatmul.mubr.bf16.gmra.mxu0 %v1781
    %v1817 = vpop.f32.mrf.mxu0
    %v1818 = vadd.f32 0.0, %v1817
    %v1819 = vpop.f32.mrf.mxu0
    %v1820 = vpop.f32.mrf.mxu0
    %v1821 = vadd.f32 0.0, %v1820
    %v1822 = vpop.f32.mrf.mxu0
    %1823 = vdwg.mxu0
    %v1824 = vpack.c.bf16 %v1821, %v1818
    %1825 = vmatprep.subr.bf16.mxu0 0
    %1826 = vmatpush1.bf16.msra.mxu0 %v1060
    %1827 = vmatprep.subr.bf16.mxu0 0
    %1828 = vmatpush1.bf16.msra.mxu0 %v1059
    %1829 = vmatprep.subr.bf16.mxu0 0
    %1830 = vmatpush1.bf16.msra.mxu0 %v1058
    %1831 = vmatprep.subr.bf16.mxu0 0
    %1832 = vmatpush1.bf16.msra.mxu0 %v1057
    %1833 = vmatprep.subr.bf16.mxu0 0
    %1834 = vmatpush1.bf16.msra.mxu0 %v1056
    %1835 = vmatprep.subr.bf16.mxu0 0
    %1836 = vmatpush1.bf16.msra.mxu0 %v1055
    %1837 = vmatprep.subr.bf16.mxu0 0
    %1838 = vmatpush1.bf16.msra.mxu0 %v1054
    %1839 = vmatprep.subr.bf16.mxu0 0
    %1840 = vmatpush1.bf16.msra.mxu0 %v1053
    %1841 = vmatprep.subr.bf16.mxu0 0
    %1842 = vmatpush2.bf16.msra.mxu0 0
    %1843 = vmatprep.subr.bf16.mxu0 0
    %1844 = vmatpush2.bf16.msra.mxu0 0
    %1845 = vmatprep.subr.bf16.mxu0 0
    %1846 = vmatpush2.bf16.msra.mxu0 0
    %1847 = vmatprep.subr.bf16.mxu0 0
    %1848 = vmatpush2.bf16.msra.mxu0 0
    %1849 = vmatprep.subr.bf16.mxu0 0
    %1850 = vmatpush2.bf16.msra.mxu0 0
    %1851 = vmatprep.subr.bf16.mxu0 0
    %1852 = vmatpush2.bf16.msra.mxu0 0
    %1853 = vmatprep.subr.bf16.mxu0 0
    %1854 = vmatpush2.bf16.msra.mxu0 0
    %1855 = vmatprep.subr.bf16.mxu0 0
    %1856 = vmatpush2.bf16.msra.mxu0 0
    %1857 = vmatprep.mubr.bf16.mxu0 0
    %1858 = vmatmul.mubr.bf16.gmra.mxu0 %v1824
    %v1859 = vpop.f32.mrf.mxu0
    %v1860 = vadd.f32 0.0, %v1859
    %v1861 = vpop.f32.mrf.mxu0
    %v1862 = vpop.f32.mrf.mxu0
    %v1863 = vadd.f32 0.0, %v1862
    %v1864 = vpop.f32.mrf.mxu0
    %1865 = vdwg.mxu0
    %1866 = vmatprep.subr.bf16.mxu0 0
    %1867 = vmatpush1.bf16.msra.mxu0 %v1149
    %1868 = vmatprep.subr.bf16.mxu0 0
    %1869 = vmatpush1.bf16.msra.mxu0 %v1148
    %1870 = vmatprep.subr.bf16.mxu0 0
    %1871 = vmatpush1.bf16.msra.mxu0 %v1147
    %1872 = vmatprep.subr.bf16.mxu0 0
    %1873 = vmatpush1.bf16.msra.mxu0 %v1146
    %1874 = vmatprep.subr.bf16.mxu0 0
    %1875 = vmatpush1.bf16.msra.mxu0 %v1145
    %1876 = vmatprep.subr.bf16.mxu0 0
    %1877 = vmatpush1.bf16.msra.mxu0 %v1144
    %1878 = vmatprep.subr.bf16.mxu0 0
    %1879 = vmatpush1.bf16.msra.mxu0 %v1143
    %1880 = vmatprep.subr.bf16.mxu0 0
    %1881 = vmatpush1.bf16.msra.mxu0 %v1142
    %1882 = vmatprep.subr.bf16.mxu0 0
    %1883 = vmatpush2.bf16.msra.mxu0 0
    %1884 = vmatprep.subr.bf16.mxu0 0
    %1885 = vmatpush2.bf16.msra.mxu0 0
    %1886 = vmatprep.subr.bf16.mxu0 0
    %1887 = vmatpush2.bf16.msra.mxu0 0
    %1888 = vmatprep.subr.bf16.mxu0 0
    %1889 = vmatpush2.bf16.msra.mxu0 0
    %1890 = vmatprep.subr.bf16.mxu0 0
    %1891 = vmatpush2.bf16.msra.mxu0 0
    %1892 = vmatprep.subr.bf16.mxu0 0
    %1893 = vmatpush2.bf16.msra.mxu0 0
    %1894 = vmatprep.subr.bf16.mxu0 0
    %1895 = vmatpush2.bf16.msra.mxu0 0
    %1896 = vmatprep.subr.bf16.mxu0 0
    %1897 = vmatpush2.bf16.msra.mxu0 0
    %1898 = vmatprep.mubr.bf16.mxu0 0
    %1899 = vmatmul.mubr.bf16.gmra.mxu0 %v1715
    %v1900 = vpop.f32.mrf.mxu0
    %v1901 = vadd.f32 %v1860, %v1900
    %v1902 = vpop.f32.mrf.mxu0
    %v1903 = vpop.f32.mrf.mxu0
    %v1904 = vadd.f32 %v1863, %v1903
    %v1905 = vpop.f32.mrf.mxu0
    %1906 = vdwg.mxu0
    %1907 = vmatprep.subr.bf16.mxu0 0
    %1908 = vmatpush1.bf16.xpose.msra.mxu0 0
    %1909 = vmatprep.subr.bf16.mxu0 0
    %1910 = vmatpush1.bf16.xpose.msra.mxu0 0
    %1911 = vmatprep.subr.bf16.mxu0 0
    %1912 = vmatpush1.bf16.xpose.msra.mxu0 0
    %1913 = vmatprep.subr.bf16.mxu0 0
    %1914 = vmatpush1.bf16.xpose.msra.mxu0 0
    %1915 = vmatprep.subr.bf16.mxu0 0
    %1916 = vmatpush1.bf16.xpose.msra.mxu0 0
    %1917 = vmatprep.subr.bf16.mxu0 0
    %1918 = vmatpush1.bf16.xpose.msra.mxu0 0
    %1919 = vmatprep.subr.bf16.mxu0 0
    %1920 = vmatpush1.bf16.xpose.msra.mxu0 0
    %1921 = vmatprep.subr.bf16.mxu0 0
    %1922 = vmatpush1.bf16.xpose.msra.mxu0 %v732
    %1923 = vmatprep.subr.bf16.mxu0 0
    %1924 = vmatpush2.bf16.xpose.msra.mxu0 0
    %1925 = vmatprep.subr.bf16.mxu0 0
    %1926 = vmatpush2.bf16.xpose.msra.mxu0 0
    %1927 = vmatprep.subr.bf16.mxu0 0
    %1928 = vmatpush2.bf16.xpose.msra.mxu0 0
    %1929 = vmatprep.subr.bf16.mxu0 0
    %1930 = vmatpush2.bf16.xpose.msra.mxu0 0
    %1931 = vmatprep.subr.bf16.mxu0 0
    %1932 = vmatpush2.bf16.xpose.msra.mxu0 0
    %1933 = vmatprep.subr.bf16.mxu0 0
    %1934 = vmatpush2.bf16.xpose.msra.mxu0 0
    %1935 = vmatprep.subr.bf16.mxu0 0
    %1936 = vmatpush2.bf16.xpose.msra.mxu0 0
    %1937 = vmatprep.subr.bf16.mxu0 0
    %1938 = vmatpush2.bf16.xpose.msra.mxu0 0
    %1939 = vmatprep.mubr.bf16.mxu0 0
    %1940 = vmatmul.mubr.bf16.gmra.mxu0 %v731
    %v1941 = vpop.f32.mrf.mxu0
    %v1942 = vadd.f32 0.0, %v1941
    %v1943 = vpop.f32.mrf.mxu0
    %v1944 = vpop.f32.mrf.mxu0
    %v1945 = vadd.f32 0.0, %v1944
    %v1946 = vpop.f32.mrf.mxu0
    %1947 = vdwg.mxu0
    %v1948 = vsel %vm843, %v1942, -inf
    %1949 = vmax.xlane.f32.xlu0 %v1948
    %v1950 = vpop.xlane.xlu0 %1949
    %v1951 = vsel %vm843, %v1945, -inf
    %1952 = vmax.xlane.f32.xlu0 %v1951
    %v1953 = vpop.xlane.xlu0 %1952
    %v1954 = vsub.f32 %v1942, %v1950
    %v1955 = vsub.f32 %v1945, %v1953
    %v1956 = vmul.f32 %v1954, 1.442695
    %v1957 = vpow.pop %v1956
    %v1958 = vmul.f32 %v1955, 1.442695
    %v1959 = vpow.pop %v1958
    %v1960 = vsel %vm843, %v1957, 0.0
    %1961 = vadd.xlane.f32.xlu0 %v1960
    %v1962 = vpop.xlane.xlu0 %1961
    %v1963 = vsel %vm843, %v1959, 0.0
    %1964 = vadd.xlane.f32.xlu0 %v1963
    %v1965 = vpop.xlane.xlu0 %1964
    %v1966 = vrcp.pop %v1962
    %v1967 = vmul.f32 %v1957, %v1966
    %v1968 = vrcp.pop %v1965
    %v1969 = vmul.f32 %v1959, %v1968
    %v1970 = vpack.c.bf16 %v1969, %v1967
    %v1972 = vsel %vm843, %v1970, 0
    %1974 = vmatprep.subr.bf16.mxu0 0
    %1975 = vmatpush1.bf16.msra.mxu0 0
    %1976 = vmatprep.subr.bf16.mxu0 0
    %1977 = vmatpush1.bf16.msra.mxu0 0
    %1978 = vmatprep.subr.bf16.mxu0 0
    %1979 = vmatpush1.bf16.msra.mxu0 0
    %1980 = vmatprep.subr.bf16.mxu0 0
    %1981 = vmatpush1.bf16.msra.mxu0 0
    %1982 = vmatprep.subr.bf16.mxu0 0
    %1983 = vmatpush1.bf16.msra.mxu0 0
    %1984 = vmatprep.subr.bf16.mxu0 0
    %1985 = vmatpush1.bf16.msra.mxu0 0
    %1986 = vmatprep.subr.bf16.mxu0 0
    %1987 = vmatpush1.bf16.msra.mxu0 0
    %1988 = vmatprep.subr.bf16.mxu0 0
    %1989 = vmatpush1.bf16.msra.mxu0 %v733
    %1990 = vmatprep.subr.bf16.mxu0 0
    %1991 = vmatpush2.bf16.msra.mxu0 0
    %1992 = vmatprep.subr.bf16.mxu0 0
    %1993 = vmatpush2.bf16.msra.mxu0 0
    %1994 = vmatprep.subr.bf16.mxu0 0
    %1995 = vmatpush2.bf16.msra.mxu0 0
    %1996 = vmatprep.subr.bf16.mxu0 0
    %1997 = vmatpush2.bf16.msra.mxu0 0
    %1998 = vmatprep.subr.bf16.mxu0 0
    %1999 = vmatpush2.bf16.msra.mxu0 0
    %2000 = vmatprep.subr.bf16.mxu0 0
    %2001 = vmatpush2.bf16.msra.mxu0 0
    %2002 = vmatprep.subr.bf16.mxu0 0
    %2003 = vmatpush2.bf16.msra.mxu0 0
    %2004 = vmatprep.subr.bf16.mxu0 0
    %2005 = vmatpush2.bf16.msra.mxu0 0
    %2006 = vmatprep.mubr.bf16.mxu0 0
    %2007 = vmatmul.mubr.bf16.gmra.mxu0 %v1972
    %v2008 = vpop.f32.mrf.mxu0
    %v2009 = vadd.f32 0.0, %v2008
    %v2010 = vpop.f32.mrf.mxu0
    %v2011 = vpop.f32.mrf.mxu0
    %v2012 = vadd.f32 0.0, %v2011
    %v2013 = vpop.f32.mrf.mxu0
    %2014 = vdwg.mxu0
    %v2015 = vpack.c.bf16 %v2012, %v2009
    %2016 = vmatprep.subr.bf16.mxu0 0
    %2017 = vmatpush1.bf16.msra.mxu0 %v1347
    %2018 = vmatprep.subr.bf16.mxu0 0
    %2019 = vmatpush1.bf16.msra.mxu0 %v1346
    %2020 = vmatprep.subr.bf16.mxu0 0
    %2021 = vmatpush1.bf16.msra.mxu0 %v1345
    %2022 = vmatprep.subr.bf16.mxu0 0
    %2023 = vmatpush1.bf16.msra.mxu0 %v1344
    %2024 = vmatprep.subr.bf16.mxu0 0
    %2025 = vmatpush1.bf16.msra.mxu0 %v1343
    %2026 = vmatprep.subr.bf16.mxu0 0
    %2027 = vmatpush1.bf16.msra.mxu0 %v1342
    %2028 = vmatprep.subr.bf16.mxu0 0
    %2029 = vmatpush1.bf16.msra.mxu0 %v1341
    %2030 = vmatprep.subr.bf16.mxu0 0
    %2031 = vmatpush1.bf16.msra.mxu0 %v1340
    %2032 = vmatprep.subr.bf16.mxu0 0
    %2033 = vmatpush2.bf16.msra.mxu0 0
    %2034 = vmatprep.subr.bf16.mxu0 0
    %2035 = vmatpush2.bf16.msra.mxu0 0
    %2036 = vmatprep.subr.bf16.mxu0 0
    %2037 = vmatpush2.bf16.msra.mxu0 0
    %2038 = vmatprep.subr.bf16.mxu0 0
    %2039 = vmatpush2.bf16.msra.mxu0 0
    %2040 = vmatprep.subr.bf16.mxu0 0
    %2041 = vmatpush2.bf16.msra.mxu0 0
    %2042 = vmatprep.subr.bf16.mxu0 0
    %2043 = vmatpush2.bf16.msra.mxu0 0
    %2044 = vmatprep.subr.bf16.mxu0 0
    %2045 = vmatpush2.bf16.msra.mxu0 0
    %2046 = vmatprep.subr.bf16.mxu0 0
    %2047 = vmatpush2.bf16.msra.mxu0 0
    %2048 = vmatprep.mubr.bf16.mxu0 0
    %2049 = vmatmul.mubr.bf16.gmra.mxu0 %v2015
    %v2050 = vpop.f32.mrf.mxu0
    %v2051 = vadd.f32 0.0, %v2050
    %v2052 = vpop.f32.mrf.mxu0
    %v2053 = vpop.f32.mrf.mxu0
    %v2054 = vadd.f32 0.0, %v2053
    %v2055 = vpop.f32.mrf.mxu0
    %2056 = vdwg.mxu0
    %v2057 = vadd.f32 %v1901, %v2051
    %v2058 = vadd.f32 %v1904, %v2054
    %2059 = vmatprep.subr.bf16.mxu0 0
    %2060 = vmatpush1.bf16.xpose.msra.mxu0 0
    %2061 = vmatprep.subr.bf16.mxu0 0
    %2062 = vmatpush1.bf16.xpose.msra.mxu0 0
    %2063 = vmatprep.subr.bf16.mxu0 0
    %2064 = vmatpush1.bf16.xpose.msra.mxu0 0
    %2065 = vmatprep.subr.bf16.mxu0 0
    %2066 = vmatpush1.bf16.xpose.msra.mxu0 0
    %2067 = vmatprep.subr.bf16.mxu0 0
    %2068 = vmatpush1.bf16.xpose.msra.mxu0 0
    %2069 = vmatprep.subr.bf16.mxu0 0
    %2070 = vmatpush1.bf16.xpose.msra.mxu0 0
    %2071 = vmatprep.subr.bf16.mxu0 0
    %2072 = vmatpush1.bf16.xpose.msra.mxu0 0
    %2073 = vmatprep.subr.bf16.mxu0 0
    %2074 = vmatpush1.bf16.xpose.msra.mxu0 %v735
    %2075 = vmatprep.subr.bf16.mxu0 0
    %2076 = vmatpush2.bf16.xpose.msra.mxu0 0
    %2077 = vmatprep.subr.bf16.mxu0 0
    %2078 = vmatpush2.bf16.xpose.msra.mxu0 0
    %2079 = vmatprep.subr.bf16.mxu0 0
    %2080 = vmatpush2.bf16.xpose.msra.mxu0 0
    %2081 = vmatprep.subr.bf16.mxu0 0
    %2082 = vmatpush2.bf16.xpose.msra.mxu0 0
    %2083 = vmatprep.subr.bf16.mxu0 0
    %2084 = vmatpush2.bf16.xpose.msra.mxu0 0
    %2085 = vmatprep.subr.bf16.mxu0 0
    %2086 = vmatpush2.bf16.xpose.msra.mxu0 0
    %2087 = vmatprep.subr.bf16.mxu0 0
    %2088 = vmatpush2.bf16.xpose.msra.mxu0 0
    %2089 = vmatprep.subr.bf16.mxu0 0
    %2090 = vmatpush2.bf16.xpose.msra.mxu0 0
    %2091 = vmatprep.mubr.bf16.mxu0 0
    %2092 = vmatmul.mubr.bf16.gmra.mxu0 %v734
    %v2093 = vpop.f32.mrf.mxu0
    %v2094 = vadd.f32 0.0, %v2093
    %v2095 = vpop.f32.mrf.mxu0
    %v2096 = vpop.f32.mrf.mxu0
    %v2097 = vadd.f32 0.0, %v2096
    %v2098 = vpop.f32.mrf.mxu0
    %2099 = vdwg.mxu0
    %v2100 = vsel %vm843, %v2094, -inf
    %2101 = vmax.xlane.f32.xlu0 %v2100
    %v2102 = vpop.xlane.xlu0 %2101
    %v2103 = vsel %vm843, %v2097, -inf
    %2104 = vmax.xlane.f32.xlu0 %v2103
    %v2105 = vpop.xlane.xlu0 %2104
    %v2106 = vsub.f32 %v2094, %v2102
    %v2107 = vsub.f32 %v2097, %v2105
    %v2108 = vmul.f32 %v2106, 1.442695
    %v2109 = vpow.pop %v2108
    %v2110 = vmul.f32 %v2107, 1.442695
    %v2111 = vpow.pop %v2110
    %v2112 = vsel %vm843, %v2109, 0.0
    %2113 = vadd.xlane.f32.xlu0 %v2112
    %v2114 = vpop.xlane.xlu0 %2113
    %v2115 = vsel %vm843, %v2111, 0.0
    %2116 = vadd.xlane.f32.xlu0 %v2115
    %v2117 = vpop.xlane.xlu0 %2116
    %v2118 = vrcp.pop %v2114
    %v2119 = vmul.f32 %v2109, %v2118
    %v2120 = vrcp.pop %v2117
    %v2121 = vmul.f32 %v2111, %v2120
    %v2122 = vpack.c.bf16 %v2121, %v2119
    %v2124 = vsel %vm843, %v2122, 0
    %2126 = vmatprep.subr.bf16.mxu0 0
    %2127 = vmatpush1.bf16.msra.mxu0 0
    %2128 = vmatprep.subr.bf16.mxu0 0
    %2129 = vmatpush1.bf16.msra.mxu0 0
    %2130 = vmatprep.subr.bf16.mxu0 0
    %2131 = vmatpush1.bf16.msra.mxu0 0
    %2132 = vmatprep.subr.bf16.mxu0 0
    %2133 = vmatpush1.bf16.msra.mxu0 0
    %2134 = vmatprep.subr.bf16.mxu0 0
    %2135 = vmatpush1.bf16.msra.mxu0 0
    %2136 = vmatprep.subr.bf16.mxu0 0
    %2137 = vmatpush1.bf16.msra.mxu0 0
    %2138 = vmatprep.subr.bf16.mxu0 0
    %2139 = vmatpush1.bf16.msra.mxu0 0
    %2140 = vmatprep.subr.bf16.mxu0 0
    %2141 = vmatpush1.bf16.msra.mxu0 %v736
    %2142 = vmatprep.subr.bf16.mxu0 0
    %2143 = vmatpush2.bf16.msra.mxu0 0
    %2144 = vmatprep.subr.bf16.mxu0 0
    %2145 = vmatpush2.bf16.msra.mxu0 0
    %2146 = vmatprep.subr.bf16.mxu0 0
    %2147 = vmatpush2.bf16.msra.mxu0 0
    %2148 = vmatprep.subr.bf16.mxu0 0
    %2149 = vmatpush2.bf16.msra.mxu0 0
    %2150 = vmatprep.subr.bf16.mxu0 0
    %2151 = vmatpush2.bf16.msra.mxu0 0
    %2152 = vmatprep.subr.bf16.mxu0 0
    %2153 = vmatpush2.bf16.msra.mxu0 0
    %2154 = vmatprep.subr.bf16.mxu0 0
    %2155 = vmatpush2.bf16.msra.mxu0 0
    %2156 = vmatprep.subr.bf16.mxu0 0
    %2157 = vmatpush2.bf16.msra.mxu0 0
    %2158 = vmatprep.mubr.bf16.mxu0 0
    %2159 = vmatmul.mubr.bf16.gmra.mxu0 %v2124
    %v2160 = vpop.f32.mrf.mxu0
    %v2161 = vadd.f32 0.0, %v2160
    %v2162 = vpop.f32.mrf.mxu0
    %v2163 = vpop.f32.mrf.mxu0
    %v2164 = vadd.f32 0.0, %v2163
    %v2165 = vpop.f32.mrf.mxu0
    %2166 = vdwg.mxu0
    %v2167 = vpack.c.bf16 %v2164, %v2161
    %2168 = vmatprep.subr.bf16.mxu0 0
    %2169 = vmatpush1.bf16.msra.mxu0 %v1547
    %2170 = vmatprep.subr.bf16.mxu0 0
    %2171 = vmatpush1.bf16.msra.mxu0 %v1546
    %2172 = vmatprep.subr.bf16.mxu0 0
    %2173 = vmatpush1.bf16.msra.mxu0 %v1545
    %2174 = vmatprep.subr.bf16.mxu0 0
    %2175 = vmatpush1.bf16.msra.mxu0 %v1544
    %2176 = vmatprep.subr.bf16.mxu0 0
    %2177 = vmatpush1.bf16.msra.mxu0 %v1543
    %2178 = vmatprep.subr.bf16.mxu0 0
    %2179 = vmatpush1.bf16.msra.mxu0 %v1542
    %2180 = vmatprep.subr.bf16.mxu0 0
    %2181 = vmatpush1.bf16.msra.mxu0 %v1541
    %2182 = vmatprep.subr.bf16.mxu0 0
    %2183 = vmatpush1.bf16.msra.mxu0 %v1540
    %2184 = vmatprep.subr.bf16.mxu0 0
    %2185 = vmatpush2.bf16.msra.mxu0 0
    %2186 = vmatprep.subr.bf16.mxu0 0
    %2187 = vmatpush2.bf16.msra.mxu0 0
    %2188 = vmatprep.subr.bf16.mxu0 0
    %2189 = vmatpush2.bf16.msra.mxu0 0
    %2190 = vmatprep.subr.bf16.mxu0 0
    %2191 = vmatpush2.bf16.msra.mxu0 0
    %2192 = vmatprep.subr.bf16.mxu0 0
    %2193 = vmatpush2.bf16.msra.mxu0 0
    %2194 = vmatprep.subr.bf16.mxu0 0
    %2195 = vmatpush2.bf16.msra.mxu0 0
    %2196 = vmatprep.subr.bf16.mxu0 0
    %2197 = vmatpush2.bf16.msra.mxu0 0
    %2198 = vmatprep.subr.bf16.mxu0 0
    %2199 = vmatpush2.bf16.msra.mxu0 0
    %2200 = vmatprep.mubr.bf16.mxu0 0
    %2201 = vmatmul.mubr.bf16.gmra.mxu0 %v2167
    %v2202 = vpop.f32.mrf.mxu0
    %v2203 = vadd.f32 0.0, %v2202
    %v2204 = vpop.f32.mrf.mxu0
    %v2205 = vpop.f32.mrf.mxu0
    %v2206 = vadd.f32 0.0, %v2205
    %v2207 = vpop.f32.mrf.mxu0
    %2208 = vdwg.mxu0
    %v2209 = vadd.f32 %v2057, %v2203
    %v2210 = vadd.f32 %v2058, %v2206
    %v2211 = vadd.f32 %v2209, %v1603
    %v2212 = vadd.f32 %v2210, %v1603
    %2213 = vst.msk [vmem:[#allocation2] sm:$0xff] %vm388, %v1605
    %2214 = vst.msk [vmem:[#allocation2 + $0x8] sm:$0xff] %vm388, %v1606
    %2215 = vst.msk [vmem:[#allocation2 + $0x10] sm:$0xff] %vm388, %v2211
    %2216 = vst.msk [vmem:[#allocation2 + $0x18] sm:$0xff] %vm388, %v2212
    // Predicated region
    $region22: #{attention_forward.1} parent=1 // pred_check
      _
    $region23: #{attention_forward.1} parent=1 // pred_check_branch
      %2218 = sbr.rel (0) target = $region25
    $region24: #{attention_forward.1} parent=1 // pred_region
      %s2220 = ssub.s32 512, 512
      %2221 = vsyncadd [#allocation3], %s2220
      %s2222 = sshll.u32 [#allocation2], 4
      %s2223 = int_to_ptr.vmem [resolvable:$true] %s2222
      %2228 = dma.vmem_to_hbm [thread:$0]  %s2223, 512, %s5, [#allocation3], 128, 128, 8
    $region25: #{attention_forward.1} parent=1 // pred_fallthru
      _
    // Predicated region
    $region26: #{attention_forward.1} parent=1 // pred_check
      _
    $region27: #{attention_forward.1} parent=1 // pred_check_branch
      %2230 = sbr.rel (0) target = $region29
    $region28: #{attention_forward.1} parent=1 // pred_region
      %2231 = dma.done [#allocation3], 512
    $region29: #{attention_forward.1} parent=1 // pred_fallthru
      _
    %2232 = vsyncpa [#allocation3], 1

</llo_original>
